<compile_context>
chip_gen: v6e
topology: v6e:2x2x1
jax: 0.10.0
libtpu: 0.0.40
codegen_flags: <defaults>
</compile_context>

<pallas_src>
import jax
import jax.numpy as jnp
from jax import lax
from jax.experimental import pallas as pl
from jax.experimental.pallas import tpu as pltpu


IN_F, HID_F, OUT_F = 13, 8, 2      # Net: BayesianLinear(13, 8) -> BayesianLinear(8, 2)
_TB_MAX = 4096                     # max batch rows per tile; >=1024 reaches ~86% of HBM BW,
                                   # 4096 rows of x is only ~0.2 MiB -> trivially in VMEM
_XLA_FALLBACK_B = 128              # below this the fixed pallas_call overhead dominates the
                                   # ~kFLOP of compute; let XLA fuse the two tiny matmuls


def _round_up(n, m):
    return pl.cdiv(n, m) * m


def _num_tensorcores():
    """Best-effort TensorCores-per-device: v7x exposes 2 TCs per chip, else 1."""
    try:
        kind = getattr(jax.devices()[0], "device_kind", "").lower()
        if "v7" in kind:
            return 2
    except Exception:
        pass
    return 1


# ----------------------------------------------------------------------------
# Fused kernel for one batch tile:
#   x_ref  : (TB, 13)  untransposed batch tile
#   w1b_ref: (8, 14)   = [W1 | b1]  packed, resident (constant index_map)
#   w2b_ref: (2, 9)    = [W2 | b2]  packed, resident
#   o_ref  : (2, TB)   output tile, batch on lanes -> lane-dense stores
# ----------------------------------------------------------------------------
def _net_kernel(x_ref, w1b_ref, w2b_ref, o_ref):
    x_blk = x_ref[...]                                   # (TB, 13) f32
    w1b = w1b_ref[...]                                   # (8, 14)
    w2b = w2b_ref[...]                                   # (2, 9)
    w1, b1 = w1b[:, :IN_F], w1b[:, IN_F:]                # (8, 13), (8, 1)
    w2, b2 = w2b[:, :HID_F], w2b[:, HID_F:]              # (2, 8),  (2, 1)

    # h[f, b] = sum_k W1[f, k] * x[b, k] : contraction over features, batch
    # ends up on the lane axis with no wrapper-side transpose of x.
    h = lax.dot_general(w1, x_blk, (((1,), (1,)), ((), ())),
                        preferred_element_type=jnp.float32) + b1     # (8, TB)
    h = jnp.maximum(h, 0.0)                                          # ReLU
    o = jnp.dot(w2, h, preferred_element_type=jnp.float32) + b2      # (2, TB)
    o_ref[...] = o.astype(o_ref.dtype)


@jax.jit
def net_pallas(x, w1, b1, w2, b2):
    """relu(x @ W1^T + b1) @ W2^T + b2  for x:(B,13), W1:(8,13), W2:(2,8)."""
    B = x.shape[0]
    x = x.astype(jnp.float32)
    w1 = w1.astype(jnp.float32)
    b1 = b1.astype(jnp.float32)
    w2 = w2.astype(jnp.float32)
    b2 = b2.astype(jnp.float32)

    if B < _XLA_FALLBACK_B:
        # Tiny batch: dispatch + DMA setup dwarf the compute; pure XLA wins.
        h = jnp.maximum(x @ w1.T + b1, 0.0)
        return h @ w2.T + b2

    # --- tile/grid selection ------------------------------------------------
    n_tc = _num_tensorcores()
    B128 = _round_up(B, 128)
    # Enough steps to (a) respect the per-tile cap and (b) give each TensorCore
    # (2 on v7x) one "parallel" step, without splintering small batches; TB is
    # derived from the step count so padding waste stays < ~128*nb rows.
    min_steps = n_tc if B128 >= 256 * n_tc else 1
    nb = max(min_steps, pl.cdiv(B128, _TB_MAX))
    TB = _round_up(pl.cdiv(B128, nb), 128)
    nb = pl.cdiv(B, TB)
    B_out = nb * TB            # output kept lane-dense; tail columns sliced off

    # Pack weights+bias into single resident blocks (one DMA each instead of 4).
    w1b = jnp.concatenate([w1, b1[:, None]], axis=1)     # (8, 14)
    w2b = jnp.concatenate([w2, b2[:, None]], axis=1)     # (2, 9)

    ot = pl.pallas_call(
        _net_kernel,
        out_shape=jax.ShapeDtypeStruct((OUT_F, B_out), jnp.float32),
        grid=(nb,),
        in_specs=[
            # x streamed over the batch grid axis; ragged last block is masked
            # by Pallas, so no wrapper-side pad/transpose exists at all.
            pl.BlockSpec((TB, IN_F), lambda i: (i, 0)),
            # parameters: constant block index -> fetched once, stay resident
            pl.BlockSpec(w1b.shape, lambda i: (0, 0)),
            pl.BlockSpec(w2b.shape, lambda i: (0, 0)),
        ],
        out_specs=pl.BlockSpec((OUT_F, TB), lambda i: (0, i)),
        compiler_params=pltpu.CompilerParams(
            # batch axis is independent -> shards across both TCs on v7x,
            # harmless on single-TC v5e/v6e (where nb == 1 for most sizes).
            dimension_semantics=("parallel",),
        ),
    )(x, w1b, w2b)

    return ot[:, :B].T                                    # back to (B, 2)


# ----------------------------------------------------------------------------
# Parameter setup mirroring BayesianLinear.__init__ (deterministic init).
#   weight_mu ~ U(-0.2, 0.2)   weight_rho ~ U(-5, -4)
#   bias_mu   ~ U(-0.2, 0.2)   bias_rho   ~ U(-5, -4)
# ----------------------------------------------------------------------------
def init_bayesian_linear(key, in_features, out_features):
    k1, k2, k3, k4 = jax.random.split(key, 4)
    w_mu = jax.random.uniform(k1, (out_features, in_features),
                              minval=-0.2, maxval=0.2, dtype=jnp.float32)
    w_rho = jax.random.uniform(k2, (out_features, in_features),
                               minval=-5.0, maxval=-4.0, dtype=jnp.float32)
    b_mu = jax.random.uniform(k3, (out_features,),
                              minval=-0.2, maxval=0.2, dtype=jnp.float32)
    b_rho = jax.random.uniform(k4, (out_features,),
                               minval=-5.0, maxval=-4.0, dtype=jnp.float32)
    return dict(w_mu=w_mu, w_rho=w_rho, b_mu=b_mu, b_rho=b_rho)


def effective_weights(params, sample, key):
    """Reparameterized sample (training/sample=True) or posterior mean weights.

    Matches BayesianLinear.forward weight selection:
      training/sample  -> mu + log1p(exp(rho)) * eps
      eval, no sample  -> mu
    """
    if not sample:
        return params["w_mu"], params["b_mu"]
    sigma = lambda rho: jnp.log1p(jnp.exp(rho))
    kw, kb = jax.random.split(key)
    w = params["w_mu"] + sigma(params["w_rho"]) * jax.random.normal(
        kw, params["w_mu"].shape, dtype=jnp.float32)
    b = params["b_mu"] + sigma(params["b_rho"]) * jax.random.normal(
        kb, params["b_mu"].shape, dtype=jnp.float32)
    return w, b


def net_forward(x, fc1, fc2, *, sample=False, key=None):
    if sample and key is None:
        key = jax.random.PRNGKey(0)
    k1 = k2 = None
    if sample:
        k1, k2 = jax.random.split(key)
    w1, b1 = effective_weights(fc1, sample, k1)
    w2, b2 = effective_weights(fc2, sample, k2)
    return net_pallas(x, w1, b1, w2, b2)


# TODO(synk): log_prior / log_variational_posterior (scalar KL terms used only
# by Net.loss, not by forward) are plain-JAX glue and not part of the kernel.
# TODO(synk): for heavy Monte-Carlo use, move the reparameterization
# (mu + softplus(rho)*eps via pltpu.prng_seed/prng_random_bits) inside the
# kernel and add a grid axis over samples so the resident x tiles are reused
# across S samples instead of re-launching S times.

if __name__ == "__main__":
    root = jax.random.PRNGKey(0)
    k_x, k_fc1, k_fc2, k_s = jax.random.split(root, 4)

    batch = 2000      # non-multiple of 128 -> exercises the masked ragged block
    x = jax.random.normal(k_x, (batch, IN_F), dtype=jnp.float32)
    fc1 = init_bayesian_linear(k_fc1, IN_F, HID_F)
    fc2 = init_bayesian_linear(k_fc2, HID_F, OUT_F)

    # Eval-mode forward (weights = posterior means), like model.eval(): (B,13)->(B,2).
    y = jax.block_until_ready(net_forward(x, fc1, fc2, sample=False))

    # Pure-JAX reference (tolerance allows for MXU bf16-pass rounding).
    h_ref = jnp.maximum(x @ fc1["w_mu"].T + fc1["b_mu"], 0.0)
    y_ref = h_ref @ fc2["w_mu"].T + fc2["b_mu"]
    assert y.shape == (batch, OUT_F)
    assert jnp.allclose(y, y_ref, atol=1e-3, rtol=1e-3), \
        float(jnp.max(jnp.abs(y - y_ref)))

    # Sampled (training-style) forward exercises the same kernel path.
    ys = jax.block_until_ready(net_forward(x, fc1, fc2, sample=True, key=k_s))
    assert ys.shape == (batch, OUT_F) and bool(jnp.all(jnp.isfinite(ys)))

    print("KERNEL_OK")
</pallas_src>

<mosaic_0001>
module attributes {stable_mosaic.version = 11 : i64} {
  func.func @_net_kernel(%arg0: i32, %arg1: memref<2048x13xf32, #tpu.memory_space<vmem>>, %arg2: memref<8x14xf32, #tpu.memory_space<vmem>>, %arg3: memref<2x9xf32, #tpu.memory_space<vmem>>, %arg4: memref<2x2048xf32, #tpu.memory_space<vmem>>) attributes {dimension_semantics = [#tpu.dimension_semantics<parallel>], iteration_bounds = array<i64: 1>, scalar_prefetch = 0 : i64, scratch_operands = 0 : i64, tpu.core_type = #tpu.core_type<tc>, window_params = [{transform_indices = @transform_0, window_bounds = array<i64: 2048, 13>}, {pipeline_mode = #tpu.pipeline_mode<synchronous>, transform_indices = @transform_1, window_bounds = array<i64: 8, 14>}, {pipeline_mode = #tpu.pipeline_mode<synchronous>, transform_indices = @transform_2, window_bounds = array<i64: 2, 9>}, {transform_indices = @transform_3, window_bounds = array<i64: 2, 2048>}]} {
    %c0 = arith.constant 0 : index
    %c0_0 = arith.constant 0 : index
    %0 = vector.load %arg1[%c0, %c0_0] : memref<2048x13xf32, #tpu.memory_space<vmem>>, vector<2048x13xf32>
    %c0_1 = arith.constant 0 : index
    %c0_2 = arith.constant 0 : index
    %1 = vector.load %arg2[%c0_1, %c0_2] : memref<8x14xf32, #tpu.memory_space<vmem>>, vector<8x14xf32>
    %c0_3 = arith.constant 0 : index
    %c0_4 = arith.constant 0 : index
    %2 = vector.load %arg3[%c0_3, %c0_4] : memref<2x9xf32, #tpu.memory_space<vmem>>, vector<2x9xf32>
    %3 = vector.extract_strided_slice %1 {offsets = [0, 0], sizes = [8, 13], strides = [1, 1]} : vector<8x14xf32> to vector<8x13xf32>
    %4 = vector.extract_strided_slice %1 {offsets = [0, 13], sizes = [8, 1], strides = [1, 1]} : vector<8x14xf32> to vector<8x1xf32>
    %5 = vector.extract_strided_slice %2 {offsets = [0, 0], sizes = [2, 8], strides = [1, 1]} : vector<2x9xf32> to vector<2x8xf32>
    %6 = vector.extract_strided_slice %2 {offsets = [0, 8], sizes = [2, 1], strides = [1, 1]} : vector<2x9xf32> to vector<2x1xf32>
    %cst = arith.constant dense<0.000000e+00> : vector<8x2048xf32>
    %7 = tpu.matmul %3, %0, %cst {dimension_numbers = #tpu.dot_dimension_numbers<[1], [1], [0], [0], [0, 0, 1, 0], [], []>} : vector<8x13xf32>, vector<2048x13xf32>, vector<8x2048xf32> -> vector<8x2048xf32>
    %8 = vector.broadcast %4 : vector<8x1xf32> to vector<8x2048xf32>
    %9 = arith.addf %7, %8 : vector<8x2048xf32>
    %cst_5 = arith.constant 0.000000e+00 : f32
    %10 = vector.broadcast %cst_5 : f32 to vector<8x2048xf32>
    %11 = arith.maximumf %9, %10 : vector<8x2048xf32>
    %cst_6 = arith.constant dense<0.000000e+00> : vector<2x2048xf32>
    %12 = tpu.matmul %5, %11, %cst_6 {dimension_numbers = #tpu.dot_dimension_numbers<[1], [0], [0], [1], [0, 0, 1, 1], [], []>} : vector<2x8xf32>, vector<8x2048xf32>, vector<2x2048xf32> -> vector<2x2048xf32>
    %13 = vector.broadcast %6 : vector<2x1xf32> to vector<2x2048xf32>
    %14 = arith.addf %12, %13 : vector<2x2048xf32>
    %c0_7 = arith.constant 0 : index
    %c0_8 = arith.constant 0 : index
    %15 = vector.load %arg4[%c0_7, %c0_8] : memref<2x2048xf32, #tpu.memory_space<vmem>>, vector<2x2048xf32>
    tpu.vector_store %arg4[%c0_7, %c0_8], %14 {strides = array<i32>} : memref<2x2048xf32, #tpu.memory_space<vmem>>, vector<2x2048xf32>,
    return
  }
  func.func @transform_0(%arg0: i32) -> (i32, i32) {
    %c0_i32 = arith.constant 0 : i32
    %c0_i32_0 = arith.constant 0 : i32
    return %arg0, %c0_i32 : i32, i32
  }
  func.func @transform_1(%arg0: i32) -> (i32, i32) {
    %c0_i32 = arith.constant 0 : i32
    %c0_i32_0 = arith.constant 0 : i32
    %c0_i32_1 = arith.constant 0 : i32
    return %c0_i32, %c0_i32_0 : i32, i32
  }
  func.func @transform_2(%arg0: i32) -> (i32, i32) {
    %c0_i32 = arith.constant 0 : i32
    %c0_i32_0 = arith.constant 0 : i32
    %c0_i32_1 = arith.constant 0 : i32
    return %c0_i32, %c0_i32_0 : i32, i32
  }
  func.func @transform_3(%arg0: i32) -> (i32, i32) {
    %c0_i32 = arith.constant 0 : i32
    %c0_i32_0 = arith.constant 0 : i32
    return %c0_i32, %arg0 : i32, i32
  }
}

</mosaic_0001>

<llo_original>
// kernel: net_pallas.1
$region0: #{net_pallas.1}
  #allocation0 [shape = 'u32[]', space=smem, size = 0x4, offset = 0x4, fixed_abs, tag = 'smem constant byte address 0x4 - core index']
  #allocation1 [shape = 'u32[144,128]{1,0:T(1,128)}', space=vmem, size = 0x12000, scoped, tag = 'internal scratch']
  %s0 = inlined_call_operand.vmem [shape: f32[2000,13], index: 0, kind: input, shape index: {}]
  %s1 = inlined_call_operand.vmem [shape: f32[8,14], index: 1, kind: input, shape index: {}]
  %s2 = inlined_call_operand.vmem [shape: f32[2,9], index: 2, kind: input, shape index: {}]
  %s3 = inlined_call_operand.vmem [shape: f32[2,2048], index: 3, kind: output, shape index: {}]
  %s4 = sld [smem:[#allocation0]]
  $region22: #{net_pallas.1} parent=0
    _
  %s6 = ssub.s32 1, %s4
  %s7 = scalar_select 0, %s6, %s4
  // Predicated region
  $region2: #{net_pallas.1} parent=0 // pred_check
    _
  $region3: #{net_pallas.1} parent=0 // pred_check_branch
    %9 = sbr.rel (0) target = $region5
  $region4: #{net_pallas.1} parent=0 // pred_region
    _
  $region5: #{net_pallas.1} parent=0 // pred_fallthru
    _
  // Predicated region
  $region6: #{net_pallas.1} parent=0 // pred_check
    _
  $region7: #{net_pallas.1} parent=0 // pred_check_branch
    %11 = sbr.rel (0) target = $region9
  $region8: #{net_pallas.1} parent=0 // pred_region
    _
  $region9: #{net_pallas.1} parent=0 // pred_fallthru
    _
  // Predicated region
  $region10: #{net_pallas.1} parent=0 // pred_check
    _
  $region11: #{net_pallas.1} parent=0 // pred_check_branch
    %13 = sbr.rel (0) target = $region13
  $region12: #{net_pallas.1} parent=0 // pred_region
    _
  $region13: #{net_pallas.1} parent=0 // pred_fallthru
    _
  %v14 = vld [vmem:[%s0] sm:$0xff]
  %v15 = vld [vmem:[%s0 + $0x8] sm:$0xff]
  %v16 = vld [vmem:[%s0 + $0x10] sm:$0xff]
  %v17 = vld [vmem:[%s0 + $0x18] sm:$0xff]
  %v18 = vld [vmem:[%s0 + $0x20] sm:$0xff]
  %v19 = vld [vmem:[%s0 + $0x28] sm:$0xff]
  %v20 = vld [vmem:[%s0 + $0x30] sm:$0xff]
  %v21 = vld [vmem:[%s0 + $0x38] sm:$0xff]
  %v22 = vld [vmem:[%s0 + $0x40] sm:$0xff]
  %v23 = vld [vmem:[%s0 + $0x48] sm:$0xff]
  %v24 = vld [vmem:[%s0 + $0x50] sm:$0xff]
  %v25 = vld [vmem:[%s0 + $0x58] sm:$0xff]
  %v26 = vld [vmem:[%s0 + $0x60] sm:$0xff]
  %v27 = vld [vmem:[%s0 + $0x68] sm:$0xff]
  %v28 = vld [vmem:[%s0 + $0x70] sm:$0xff]
  %v29 = vld [vmem:[%s0 + $0x78] sm:$0xff]
  %v30 = vld [vmem:[%s0 + $0x80] sm:$0xff]
  %v31 = vld [vmem:[%s0 + $0x88] sm:$0xff]
  %v32 = vld [vmem:[%s0 + $0x90] sm:$0xff]
  %v33 = vld [vmem:[%s0 + $0x98] sm:$0xff]
  %v34 = vld [vmem:[%s0 + $0xa0] sm:$0xff]
  %v35 = vld [vmem:[%s0 + $0xa8] sm:$0xff]
  %v36 = vld [vmem:[%s0 + $0xb0] sm:$0xff]
  %v37 = vld [vmem:[%s0 + $0xb8] sm:$0xff]
  %v38 = vld [vmem:[%s0 + $0xc0] sm:$0xff]
  %v39 = vld [vmem:[%s0 + $0xc8] sm:$0xff]
  %v40 = vld [vmem:[%s0 + $0xd0] sm:$0xff]
  %v41 = vld [vmem:[%s0 + $0xd8] sm:$0xff]
  %v42 = vld [vmem:[%s0 + $0xe0] sm:$0xff]
  %v43 = vld [vmem:[%s0 + $0xe8] sm:$0xff]
  %v44 = vld [vmem:[%s0 + $0xf0] sm:$0xff]
  %v45 = vld [vmem:[%s0 + $0xf8] sm:$0xff]
  %v46 = vld [vmem:[%s0 + $0x100] sm:$0xff]
  %v47 = vld [vmem:[%s0 + $0x108] sm:$0xff]
  %v48 = vld [vmem:[%s0 + $0x110] sm:$0xff]
  %v49 = vld [vmem:[%s0 + $0x118] sm:$0xff]
  %v50 = vld [vmem:[%s0 + $0x120] sm:$0xff]
  %v51 = vld [vmem:[%s0 + $0x128] sm:$0xff]
  %v52 = vld [vmem:[%s0 + $0x130] sm:$0xff]
  %v53 = vld [vmem:[%s0 + $0x138] sm:$0xff]
  %v54 = vld [vmem:[%s0 + $0x140] sm:$0xff]
  %v55 = vld [vmem:[%s0 + $0x148] sm:$0xff]
  %v56 = vld [vmem:[%s0 + $0x150] sm:$0xff]
  %v57 = vld [vmem:[%s0 + $0x158] sm:$0xff]
  %v58 = vld [vmem:[%s0 + $0x160] sm:$0xff]
  %v59 = vld [vmem:[%s0 + $0x168] sm:$0xff]
  %v60 = vld [vmem:[%s0 + $0x170] sm:$0xff]
  %v61 = vld [vmem:[%s0 + $0x178] sm:$0xff]
  %v62 = vld [vmem:[%s0 + $0x180] sm:$0xff]
  %v63 = vld [vmem:[%s0 + $0x188] sm:$0xff]
  %v64 = vld [vmem:[%s0 + $0x190] sm:$0xff]
  %v65 = vld [vmem:[%s0 + $0x198] sm:$0xff]
  %v66 = vld [vmem:[%s0 + $0x1a0] sm:$0xff]
  %v67 = vld [vmem:[%s0 + $0x1a8] sm:$0xff]
  %v68 = vld [vmem:[%s0 + $0x1b0] sm:$0xff]
  %v69 = vld [vmem:[%s0 + $0x1b8] sm:$0xff]
  %v70 = vld [vmem:[%s0 + $0x1c0] sm:$0xff]
  %v71 = vld [vmem:[%s0 + $0x1c8] sm:$0xff]
  %v72 = vld [vmem:[%s0 + $0x1d0] sm:$0xff]
  %v73 = vld [vmem:[%s0 + $0x1d8] sm:$0xff]
  %v74 = vld [vmem:[%s0 + $0x1e0] sm:$0xff]
  %v75 = vld [vmem:[%s0 + $0x1e8] sm:$0xff]
  %v76 = vld [vmem:[%s0 + $0x1f0] sm:$0xff]
  %v77 = vld [vmem:[%s0 + $0x1f8] sm:$0xff]
  %v78 = vld [vmem:[%s0 + $0x200] sm:$0xff]
  %v79 = vld [vmem:[%s0 + $0x208] sm:$0xff]
  %v80 = vld [vmem:[%s0 + $0x210] sm:$0xff]
  %v81 = vld [vmem:[%s0 + $0x218] sm:$0xff]
  %v82 = vld [vmem:[%s0 + $0x220] sm:$0xff]
  %v83 = vld [vmem:[%s0 + $0x228] sm:$0xff]
  %v84 = vld [vmem:[%s0 + $0x230] sm:$0xff]
  %v85 = vld [vmem:[%s0 + $0x238] sm:$0xff]
  %v86 = vld [vmem:[%s0 + $0x240] sm:$0xff]
  %v87 = vld [vmem:[%s0 + $0x248] sm:$0xff]
  %v88 = vld [vmem:[%s0 + $0x250] sm:$0xff]
  %v89 = vld [vmem:[%s0 + $0x258] sm:$0xff]
  %v90 = vld [vmem:[%s0 + $0x260] sm:$0xff]
  %v91 = vld [vmem:[%s0 + $0x268] sm:$0xff]
  %v92 = vld [vmem:[%s0 + $0x270] sm:$0xff]
  %v93 = vld [vmem:[%s0 + $0x278] sm:$0xff]
  %v94 = vld [vmem:[%s0 + $0x280] sm:$0xff]
  %v95 = vld [vmem:[%s0 + $0x288] sm:$0xff]
  %v96 = vld [vmem:[%s0 + $0x290] sm:$0xff]
  %v97 = vld [vmem:[%s0 + $0x298] sm:$0xff]
  %v98 = vld [vmem:[%s0 + $0x2a0] sm:$0xff]
  %v99 = vld [vmem:[%s0 + $0x2a8] sm:$0xff]
  %v100 = vld [vmem:[%s0 + $0x2b0] sm:$0xff]
  %v101 = vld [vmem:[%s0 + $0x2b8] sm:$0xff]
  %v102 = vld [vmem:[%s0 + $0x2c0] sm:$0xff]
  %v103 = vld [vmem:[%s0 + $0x2c8] sm:$0xff]
  %v104 = vld [vmem:[%s0 + $0x2d0] sm:$0xff]
  %v105 = vld [vmem:[%s0 + $0x2d8] sm:$0xff]
  %v106 = vld [vmem:[%s0 + $0x2e0] sm:$0xff]
  %v107 = vld [vmem:[%s0 + $0x2e8] sm:$0xff]
  %v108 = vld [vmem:[%s0 + $0x2f0] sm:$0xff]
  %v109 = vld [vmem:[%s0 + $0x2f8] sm:$0xff]
  %v110 = vld [vmem:[%s0 + $0x300] sm:$0xff]
  %v111 = vld [vmem:[%s0 + $0x308] sm:$0xff]
  %v112 = vld [vmem:[%s0 + $0x310] sm:$0xff]
  %v113 = vld [vmem:[%s0 + $0x318] sm:$0xff]
  %v114 = vld [vmem:[%s0 + $0x320] sm:$0xff]
  %v115 = vld [vmem:[%s0 + $0x328] sm:$0xff]
  %v116 = vld [vmem:[%s0 + $0x330] sm:$0xff]
  %v117 = vld [vmem:[%s0 + $0x338] sm:$0xff]
  %v118 = vld [vmem:[%s0 + $0x340] sm:$0xff]
  %v119 = vld [vmem:[%s0 + $0x348] sm:$0xff]
  %v120 = vld [vmem:[%s0 + $0x350] sm:$0xff]
  %v121 = vld [vmem:[%s0 + $0x358] sm:$0xff]
  %v122 = vld [vmem:[%s0 + $0x360] sm:$0xff]
  %v123 = vld [vmem:[%s0 + $0x368] sm:$0xff]
  %v124 = vld [vmem:[%s0 + $0x370] sm:$0xff]
  %v125 = vld [vmem:[%s0 + $0x378] sm:$0xff]
  %v126 = vld [vmem:[%s0 + $0x380] sm:$0xff]
  %v127 = vld [vmem:[%s0 + $0x388] sm:$0xff]
  %v128 = vld [vmem:[%s0 + $0x390] sm:$0xff]
  %v129 = vld [vmem:[%s0 + $0x398] sm:$0xff]
  %v130 = vld [vmem:[%s0 + $0x3a0] sm:$0xff]
  %v131 = vld [vmem:[%s0 + $0x3a8] sm:$0xff]
  %v132 = vld [vmem:[%s0 + $0x3b0] sm:$0xff]
  %v133 = vld [vmem:[%s0 + $0x3b8] sm:$0xff]
  %v134 = vld [vmem:[%s0 + $0x3c0] sm:$0xff]
  %v135 = vld [vmem:[%s0 + $0x3c8] sm:$0xff]
  %v136 = vld [vmem:[%s0 + $0x3d0] sm:$0xff]
  %v137 = vld [vmem:[%s0 + $0x3d8] sm:$0xff]
  %v138 = vld [vmem:[%s0 + $0x3e0] sm:$0xff]
  %v139 = vld [vmem:[%s0 + $0x3e8] sm:$0xff]
  %v140 = vld [vmem:[%s0 + $0x3f0] sm:$0xff]
  %v141 = vld [vmem:[%s0 + $0x3f8] sm:$0xff]
  %v142 = vld [vmem:[%s0 + $0x400] sm:$0xff]
  %v143 = vld [vmem:[%s0 + $0x408] sm:$0xff]
  %v144 = vld [vmem:[%s0 + $0x410] sm:$0xff]
  %v145 = vld [vmem:[%s0 + $0x418] sm:$0xff]
  %v146 = vld [vmem:[%s0 + $0x420] sm:$0xff]
  %v147 = vld [vmem:[%s0 + $0x428] sm:$0xff]
  %v148 = vld [vmem:[%s0 + $0x430] sm:$0xff]
  %v149 = vld [vmem:[%s0 + $0x438] sm:$0xff]
  %v150 = vld [vmem:[%s0 + $0x440] sm:$0xff]
  %v151 = vld [vmem:[%s0 + $0x448] sm:$0xff]
  %v152 = vld [vmem:[%s0 + $0x450] sm:$0xff]
  %v153 = vld [vmem:[%s0 + $0x458] sm:$0xff]
  %v154 = vld [vmem:[%s0 + $0x460] sm:$0xff]
  %v155 = vld [vmem:[%s0 + $0x468] sm:$0xff]
  %v156 = vld [vmem:[%s0 + $0x470] sm:$0xff]
  %v157 = vld [vmem:[%s0 + $0x478] sm:$0xff]
  %v158 = vld [vmem:[%s0 + $0x480] sm:$0xff]
  %v159 = vld [vmem:[%s0 + $0x488] sm:$0xff]
  %v160 = vld [vmem:[%s0 + $0x490] sm:$0xff]
  %v161 = vld [vmem:[%s0 + $0x498] sm:$0xff]
  %v162 = vld [vmem:[%s0 + $0x4a0] sm:$0xff]
  %v163 = vld [vmem:[%s0 + $0x4a8] sm:$0xff]
  %v164 = vld [vmem:[%s0 + $0x4b0] sm:$0xff]
  %v165 = vld [vmem:[%s0 + $0x4b8] sm:$0xff]
  %v166 = vld [vmem:[%s0 + $0x4c0] sm:$0xff]
  %v167 = vld [vmem:[%s0 + $0x4c8] sm:$0xff]
  %v168 = vld [vmem:[%s0 + $0x4d0] sm:$0xff]
  %v169 = vld [vmem:[%s0 + $0x4d8] sm:$0xff]
  %v170 = vld [vmem:[%s0 + $0x4e0] sm:$0xff]
  %v171 = vld [vmem:[%s0 + $0x4e8] sm:$0xff]
  %v172 = vld [vmem:[%s0 + $0x4f0] sm:$0xff]
  %v173 = vld [vmem:[%s0 + $0x4f8] sm:$0xff]
  %v174 = vld [vmem:[%s0 + $0x500] sm:$0xff]
  %v175 = vld [vmem:[%s0 + $0x508] sm:$0xff]
  %v176 = vld [vmem:[%s0 + $0x510] sm:$0xff]
  %v177 = vld [vmem:[%s0 + $0x518] sm:$0xff]
  %v178 = vld [vmem:[%s0 + $0x520] sm:$0xff]
  %v179 = vld [vmem:[%s0 + $0x528] sm:$0xff]
  %v180 = vld [vmem:[%s0 + $0x530] sm:$0xff]
  %v181 = vld [vmem:[%s0 + $0x538] sm:$0xff]
  %v182 = vld [vmem:[%s0 + $0x540] sm:$0xff]
  %v183 = vld [vmem:[%s0 + $0x548] sm:$0xff]
  %v184 = vld [vmem:[%s0 + $0x550] sm:$0xff]
  %v185 = vld [vmem:[%s0 + $0x558] sm:$0xff]
  %v186 = vld [vmem:[%s0 + $0x560] sm:$0xff]
  %v187 = vld [vmem:[%s0 + $0x568] sm:$0xff]
  %v188 = vld [vmem:[%s0 + $0x570] sm:$0xff]
  %v189 = vld [vmem:[%s0 + $0x578] sm:$0xff]
  %v190 = vld [vmem:[%s0 + $0x580] sm:$0xff]
  %v191 = vld [vmem:[%s0 + $0x588] sm:$0xff]
  %v192 = vld [vmem:[%s0 + $0x590] sm:$0xff]
  %v193 = vld [vmem:[%s0 + $0x598] sm:$0xff]
  %v194 = vld [vmem:[%s0 + $0x5a0] sm:$0xff]
  %v195 = vld [vmem:[%s0 + $0x5a8] sm:$0xff]
  %v196 = vld [vmem:[%s0 + $0x5b0] sm:$0xff]
  %v197 = vld [vmem:[%s0 + $0x5b8] sm:$0xff]
  %v198 = vld [vmem:[%s0 + $0x5c0] sm:$0xff]
  %v199 = vld [vmem:[%s0 + $0x5c8] sm:$0xff]
  %v200 = vld [vmem:[%s0 + $0x5d0] sm:$0xff]
  %v201 = vld [vmem:[%s0 + $0x5d8] sm:$0xff]
  %v202 = vld [vmem:[%s0 + $0x5e0] sm:$0xff]
  %v203 = vld [vmem:[%s0 + $0x5e8] sm:$0xff]
  %v204 = vld [vmem:[%s0 + $0x5f0] sm:$0xff]
  %v205 = vld [vmem:[%s0 + $0x5f8] sm:$0xff]
  %v206 = vld [vmem:[%s0 + $0x600] sm:$0xff]
  %v207 = vld [vmem:[%s0 + $0x608] sm:$0xff]
  %v208 = vld [vmem:[%s0 + $0x610] sm:$0xff]
  %v209 = vld [vmem:[%s0 + $0x618] sm:$0xff]
  %v210 = vld [vmem:[%s0 + $0x620] sm:$0xff]
  %v211 = vld [vmem:[%s0 + $0x628] sm:$0xff]
  %v212 = vld [vmem:[%s0 + $0x630] sm:$0xff]
  %v213 = vld [vmem:[%s0 + $0x638] sm:$0xff]
  %v214 = vld [vmem:[%s0 + $0x640] sm:$0xff]
  %v215 = vld [vmem:[%s0 + $0x648] sm:$0xff]
  %v216 = vld [vmem:[%s0 + $0x650] sm:$0xff]
  %v217 = vld [vmem:[%s0 + $0x658] sm:$0xff]
  %v218 = vld [vmem:[%s0 + $0x660] sm:$0xff]
  %v219 = vld [vmem:[%s0 + $0x668] sm:$0xff]
  %v220 = vld [vmem:[%s0 + $0x670] sm:$0xff]
  %v221 = vld [vmem:[%s0 + $0x678] sm:$0xff]
  %v222 = vld [vmem:[%s0 + $0x680] sm:$0xff]
  %v223 = vld [vmem:[%s0 + $0x688] sm:$0xff]
  %v224 = vld [vmem:[%s0 + $0x690] sm:$0xff]
  %v225 = vld [vmem:[%s0 + $0x698] sm:$0xff]
  %v226 = vld [vmem:[%s0 + $0x6a0] sm:$0xff]
  %v227 = vld [vmem:[%s0 + $0x6a8] sm:$0xff]
  %v228 = vld [vmem:[%s0 + $0x6b0] sm:$0xff]
  %v229 = vld [vmem:[%s0 + $0x6b8] sm:$0xff]
  %v230 = vld [vmem:[%s0 + $0x6c0] sm:$0xff]
  %v231 = vld [vmem:[%s0 + $0x6c8] sm:$0xff]
  %v232 = vld [vmem:[%s0 + $0x6d0] sm:$0xff]
  %v233 = vld [vmem:[%s0 + $0x6d8] sm:$0xff]
  %v234 = vld [vmem:[%s0 + $0x6e0] sm:$0xff]
  %v235 = vld [vmem:[%s0 + $0x6e8] sm:$0xff]
  %v236 = vld [vmem:[%s0 + $0x6f0] sm:$0xff]
  %v237 = vld [vmem:[%s0 + $0x6f8] sm:$0xff]
  %v238 = vld [vmem:[%s0 + $0x700] sm:$0xff]
  %v239 = vld [vmem:[%s0 + $0x708] sm:$0xff]
  %v240 = vld [vmem:[%s0 + $0x710] sm:$0xff]
  %v241 = vld [vmem:[%s0 + $0x718] sm:$0xff]
  %v242 = vld [vmem:[%s0 + $0x720] sm:$0xff]
  %v243 = vld [vmem:[%s0 + $0x728] sm:$0xff]
  %v244 = vld [vmem:[%s0 + $0x730] sm:$0xff]
  %v245 = vld [vmem:[%s0 + $0x738] sm:$0xff]
  %v246 = vld [vmem:[%s0 + $0x740] sm:$0xff]
  %v247 = vld [vmem:[%s0 + $0x748] sm:$0xff]
  %v248 = vld [vmem:[%s0 + $0x750] sm:$0xff]
  %v249 = vld [vmem:[%s0 + $0x758] sm:$0xff]
  %v250 = vld [vmem:[%s0 + $0x760] sm:$0xff]
  %v251 = vld [vmem:[%s0 + $0x768] sm:$0xff]
  %v252 = vld [vmem:[%s0 + $0x770] sm:$0xff]
  %v253 = vld [vmem:[%s0 + $0x778] sm:$0xff]
  %v254 = vld [vmem:[%s0 + $0x780] sm:$0xff]
  %v255 = vld [vmem:[%s0 + $0x788] sm:$0xff]
  %v256 = vld [vmem:[%s0 + $0x790] sm:$0xff]
  %v257 = vld [vmem:[%s0 + $0x798] sm:$0xff]
  %v258 = vld [vmem:[%s0 + $0x7a0] sm:$0xff]
  %v259 = vld [vmem:[%s0 + $0x7a8] sm:$0xff]
  %v260 = vld [vmem:[%s0 + $0x7b0] sm:$0xff]
  %v261 = vld [vmem:[%s0 + $0x7b8] sm:$0xff]
  %v262 = vld [vmem:[%s0 + $0x7c0] sm:$0xff]
  %v263 = vld [vmem:[%s0 + $0x7c8] sm:$0xff]
  %v264 = vld [vmem:[%s0 + $0x7d0] sm:$0xff]
  %v265 = vld [vmem:[%s0 + $0x7d8] sm:$0xff]
  %v266 = vld [vmem:[%s0 + $0x7e0] sm:$0xff]
  %v267 = vld [vmem:[%s0 + $0x7e8] sm:$0xff]
  %v268 = vld [vmem:[%s0 + $0x7f0] sm:$0xff]
  %v269 = vld [vmem:[%s0 + $0x7f8] sm:$0xff]
  %v270 = vld [vmem:[%s1] sm:$0xff]
  %v271 = vld [vmem:[%s2] sm:$0x3]
  %273 = vset.pattern.permute.xlu0 13
  %274 = vperm.xlu0 %273, %v270
  %v275 = vpop.permute.xlu0 %274
  %vm277 = vcmask 105472
  %v278 = vsel %vm277, %v270, 0
  %v281 = vsel %vm277, %v14, 0
  %v284 = vsel %vm277, %v15, 0
  %v287 = vsel %vm277, %v16, 0
  %v290 = vsel %vm277, %v17, 0
  %v293 = vsel %vm277, %v18, 0
  %v296 = vsel %vm277, %v19, 0
  %v299 = vsel %vm277, %v20, 0
  %v302 = vsel %vm277, %v21, 0
  %v305 = vsel %vm277, %v22, 0
  %v308 = vsel %vm277, %v23, 0
  %v311 = vsel %vm277, %v24, 0
  %v314 = vsel %vm277, %v25, 0
  %v317 = vsel %vm277, %v26, 0
  %v320 = vsel %vm277, %v27, 0
  %v323 = vsel %vm277, %v28, 0
  %v326 = vsel %vm277, %v29, 0
  %v329 = vsel %vm277, %v30, 0
  %v332 = vsel %vm277, %v31, 0
  %v335 = vsel %vm277, %v32, 0
  %v338 = vsel %vm277, %v33, 0
  %v341 = vsel %vm277, %v34, 0
  %v344 = vsel %vm277, %v35, 0
  %v347 = vsel %vm277, %v36, 0
  %v350 = vsel %vm277, %v37, 0
  %v353 = vsel %vm277, %v38, 0
  %v356 = vsel %vm277, %v39, 0
  %v359 = vsel %vm277, %v40, 0
  %v362 = vsel %vm277, %v41, 0
  %v365 = vsel %vm277, %v42, 0
  %v368 = vsel %vm277, %v43, 0
  %v371 = vsel %vm277, %v44, 0
  %v374 = vsel %vm277, %v45, 0
  %v377 = vsel %vm277, %v46, 0
  %v380 = vsel %vm277, %v47, 0
  %v383 = vsel %vm277, %v48, 0
  %v386 = vsel %vm277, %v49, 0
  %v389 = vsel %vm277, %v50, 0
  %v392 = vsel %vm277, %v51, 0
  %v395 = vsel %vm277, %v52, 0
  %v398 = vsel %vm277, %v53, 0
  %v401 = vsel %vm277, %v54, 0
  %v404 = vsel %vm277, %v55, 0
  %v407 = vsel %vm277, %v56, 0
  %v410 = vsel %vm277, %v57, 0
  %v413 = vsel %vm277, %v58, 0
  %v416 = vsel %vm277, %v59, 0
  %v419 = vsel %vm277, %v60, 0
  %v422 = vsel %vm277, %v61, 0
  %v425 = vsel %vm277, %v62, 0
  %v428 = vsel %vm277, %v63, 0
  %v431 = vsel %vm277, %v64, 0
  %v434 = vsel %vm277, %v65, 0
  %v437 = vsel %vm277, %v66, 0
  %v440 = vsel %vm277, %v67, 0
  %v443 = vsel %vm277, %v68, 0
  %v446 = vsel %vm277, %v69, 0
  %v449 = vsel %vm277, %v70, 0
  %v452 = vsel %vm277, %v71, 0
  %v455 = vsel %vm277, %v72, 0
  %v458 = vsel %vm277, %v73, 0
  %v461 = vsel %vm277, %v74, 0
  %v464 = vsel %vm277, %v75, 0
  %v467 = vsel %vm277, %v76, 0
  %v470 = vsel %vm277, %v77, 0
  %v473 = vsel %vm277, %v78, 0
  %v476 = vsel %vm277, %v79, 0
  %v479 = vsel %vm277, %v80, 0
  %v482 = vsel %vm277, %v81, 0
  %v485 = vsel %vm277, %v82, 0
  %v488 = vsel %vm277, %v83, 0
  %v491 = vsel %vm277, %v84, 0
  %v494 = vsel %vm277, %v85, 0
  %v497 = vsel %vm277, %v86, 0
  %v500 = vsel %vm277, %v87, 0
  %v503 = vsel %vm277, %v88, 0
  %v506 = vsel %vm277, %v89, 0
  %v509 = vsel %vm277, %v90, 0
  %v512 = vsel %vm277, %v91, 0
  %v515 = vsel %vm277, %v92, 0
  %v518 = vsel %vm277, %v93, 0
  %v521 = vsel %vm277, %v94, 0
  %v524 = vsel %vm277, %v95, 0
  %v527 = vsel %vm277, %v96, 0
  %v530 = vsel %vm277, %v97, 0
  %v533 = vsel %vm277, %v98, 0
  %v536 = vsel %vm277, %v99, 0
  %v539 = vsel %vm277, %v100, 0
  %v542 = vsel %vm277, %v101, 0
  %v545 = vsel %vm277, %v102, 0
  %v548 = vsel %vm277, %v103, 0
  %v551 = vsel %vm277, %v104, 0
  %v554 = vsel %vm277, %v105, 0
  %v557 = vsel %vm277, %v106, 0
  %v560 = vsel %vm277, %v107, 0
  %v563 = vsel %vm277, %v108, 0
  %v566 = vsel %vm277, %v109, 0
  %v569 = vsel %vm277, %v110, 0
  %v572 = vsel %vm277, %v111, 0
  %v575 = vsel %vm277, %v112, 0
  %v578 = vsel %vm277, %v113, 0
  %v581 = vsel %vm277, %v114, 0
  %v584 = vsel %vm277, %v115, 0
  %v587 = vsel %vm277, %v116, 0
  %v590 = vsel %vm277, %v117, 0
  %v593 = vsel %vm277, %v118, 0
  %v596 = vsel %vm277, %v119, 0
  %v599 = vsel %vm277, %v120, 0
  %v602 = vsel %vm277, %v121, 0
  %v605 = vsel %vm277, %v122, 0
  %v608 = vsel %vm277, %v123, 0
  %v611 = vsel %vm277, %v124, 0
  %v614 = vsel %vm277, %v125, 0
  %v617 = vsel %vm277, %v126, 0
  %v620 = vsel %vm277, %v127, 0
  %v623 = vsel %vm277, %v128, 0
  %v626 = vsel %vm277, %v129, 0
  %v629 = vsel %vm277, %v130, 0
  %v632 = vsel %vm277, %v131, 0
  %v635 = vsel %vm277, %v132, 0
  %v638 = vsel %vm277, %v133, 0
  %v641 = vsel %vm277, %v134, 0
  %v644 = vsel %vm277, %v135, 0
  %v647 = vsel %vm277, %v136, 0
  %v650 = vsel %vm277, %v137, 0
  %v653 = vsel %vm277, %v138, 0
  %v656 = vsel %vm277, %v139, 0
  %v659 = vsel %vm277, %v140, 0
  %v662 = vsel %vm277, %v141, 0
  %v665 = vsel %vm277, %v142, 0
  %v668 = vsel %vm277, %v143, 0
  %v671 = vsel %vm277, %v144, 0
  %v674 = vsel %vm277, %v145, 0
  %v677 = vsel %vm277, %v146, 0
  %v680 = vsel %vm277, %v147, 0
  %v683 = vsel %vm277, %v148, 0
  %v686 = vsel %vm277, %v149, 0
  %v689 = vsel %vm277, %v150, 0
  %v692 = vsel %vm277, %v151, 0
  %v695 = vsel %vm277, %v152, 0
  %v698 = vsel %vm277, %v153, 0
  %v701 = vsel %vm277, %v154, 0
  %v704 = vsel %vm277, %v155, 0
  %v707 = vsel %vm277, %v156, 0
  %v710 = vsel %vm277, %v157, 0
  %v713 = vsel %vm277, %v158, 0
  %v716 = vsel %vm277, %v159, 0
  %v719 = vsel %vm277, %v160, 0
  %v722 = vsel %vm277, %v161, 0
  %v725 = vsel %vm277, %v162, 0
  %v728 = vsel %vm277, %v163, 0
  %v731 = vsel %vm277, %v164, 0
  %v734 = vsel %vm277, %v165, 0
  %v737 = vsel %vm277, %v166, 0
  %v740 = vsel %vm277, %v167, 0
  %v743 = vsel %vm277, %v168, 0
  %v746 = vsel %vm277, %v169, 0
  %v749 = vsel %vm277, %v170, 0
  %v752 = vsel %vm277, %v171, 0
  %v755 = vsel %vm277, %v172, 0
  %v758 = vsel %vm277, %v173, 0
  %v761 = vsel %vm277, %v174, 0
  %v764 = vsel %vm277, %v175, 0
  %v767 = vsel %vm277, %v176, 0
  %v770 = vsel %vm277, %v177, 0
  %v773 = vsel %vm277, %v178, 0
  %v776 = vsel %vm277, %v179, 0
  %v779 = vsel %vm277, %v180, 0
  %v782 = vsel %vm277, %v181, 0
  %v785 = vsel %vm277, %v182, 0
  %v788 = vsel %vm277, %v183, 0
  %v791 = vsel %vm277, %v184, 0
  %v794 = vsel %vm277, %v185, 0
  %v797 = vsel %vm277, %v186, 0
  %v800 = vsel %vm277, %v187, 0
  %v803 = vsel %vm277, %v188, 0
  %v806 = vsel %vm277, %v189, 0
  %v809 = vsel %vm277, %v190, 0
  %v812 = vsel %vm277, %v191, 0
  %v815 = vsel %vm277, %v192, 0
  %v818 = vsel %vm277, %v193, 0
  %v821 = vsel %vm277, %v194, 0
  %v824 = vsel %vm277, %v195, 0
  %v827 = vsel %vm277, %v196, 0
  %v830 = vsel %vm277, %v197, 0
  %v833 = vsel %vm277, %v198, 0
  %v836 = vsel %vm277, %v199, 0
  %v839 = vsel %vm277, %v200, 0
  %v842 = vsel %vm277, %v201, 0
  %v845 = vsel %vm277, %v202, 0
  %v848 = vsel %vm277, %v203, 0
  %v851 = vsel %vm277, %v204, 0
  %v854 = vsel %vm277, %v205, 0
  %v857 = vsel %vm277, %v206, 0
  %v860 = vsel %vm277, %v207, 0
  %v863 = vsel %vm277, %v208, 0
  %v866 = vsel %vm277, %v209, 0
  %v869 = vsel %vm277, %v210, 0
  %v872 = vsel %vm277, %v211, 0
  %v875 = vsel %vm277, %v212, 0
  %v878 = vsel %vm277, %v213, 0
  %v881 = vsel %vm277, %v214, 0
  %v884 = vsel %vm277, %v215, 0
  %v887 = vsel %vm277, %v216, 0
  %v890 = vsel %vm277, %v217, 0
  %v893 = vsel %vm277, %v218, 0
  %v896 = vsel %vm277, %v219, 0
  %v899 = vsel %vm277, %v220, 0
  %v902 = vsel %vm277, %v221, 0
  %v905 = vsel %vm277, %v222, 0
  %v908 = vsel %vm277, %v223, 0
  %v911 = vsel %vm277, %v224, 0
  %v914 = vsel %vm277, %v225, 0
  %v917 = vsel %vm277, %v226, 0
  %v920 = vsel %vm277, %v227, 0
  %v923 = vsel %vm277, %v228, 0
  %v926 = vsel %vm277, %v229, 0
  %v929 = vsel %vm277, %v230, 0
  %v932 = vsel %vm277, %v231, 0
  %v935 = vsel %vm277, %v232, 0
  %v938 = vsel %vm277, %v233, 0
  %v941 = vsel %vm277, %v234, 0
  %v944 = vsel %vm277, %v235, 0
  %v947 = vsel %vm277, %v236, 0
  %v950 = vsel %vm277, %v237, 0
  %v953 = vsel %vm277, %v238, 0
  %v956 = vsel %vm277, %v239, 0
  %v959 = vsel %vm277, %v240, 0
  %v962 = vsel %vm277, %v241, 0
  %v965 = vsel %vm277, %v242, 0
  %v968 = vsel %vm277, %v243, 0
  %v971 = vsel %vm277, %v244, 0
  %v974 = vsel %vm277, %v245, 0
  %v977 = vsel %vm277, %v246, 0
  %v980 = vsel %vm277, %v247, 0
  %v983 = vsel %vm277, %v248, 0
  %v986 = vsel %vm277, %v249, 0
  %v989 = vsel %vm277, %v250, 0
  %v992 = vsel %vm277, %v251, 0
  %v995 = vsel %vm277, %v252, 0
  %v998 = vsel %vm277, %v253, 0
  %v1001 = vsel %vm277, %v254, 0
  %v1004 = vsel %vm277, %v255, 0
  %v1007 = vsel %vm277, %v256, 0
  %v1010 = vsel %vm277, %v257, 0
  %v1013 = vsel %vm277, %v258, 0
  %v1016 = vsel %vm277, %v259, 0
  %v1019 = vsel %vm277, %v260, 0
  %v1022 = vsel %vm277, %v261, 0
  %v1025 = vsel %vm277, %v262, 0
  %v1028 = vsel %vm277, %v263, 0
  %v1031 = vsel %vm277, %v264, 0
  %v1034 = vsel %vm277, %v265, 0
  %v1037 = vsel %vm277, %v266, 0
  %v1040 = vsel %vm277, %v267, 0
  %v1043 = vsel %vm277, %v268, 0
  %v1046 = vsel %vm277, %v269, 0
  %1048 = vmatprep.subr.mxu0 0.0
  %1049 = vmatpush1.xpose.msra.mxu0 %v326
  %1050 = vmatprep.subr.mxu0 0.0
  %1051 = vmatpush1.xpose.msra.mxu0 %v323
  %1052 = vmatprep.subr.mxu0 0.0
  %1053 = vmatpush1.xpose.msra.mxu0 %v320
  %1054 = vmatprep.subr.mxu0 0.0
  %1055 = vmatpush1.xpose.msra.mxu0 %v317
  %1056 = vmatprep.subr.mxu0 0.0
  %1057 = vmatpush1.xpose.msra.mxu0 %v314
  %1058 = vmatprep.subr.mxu0 0.0
  %1059 = vmatpush1.xpose.msra.mxu0 %v311
  %1060 = vmatprep.subr.mxu0 0.0
  %1061 = vmatpush1.xpose.msra.mxu0 %v308
  %1062 = vmatprep.subr.mxu0 0.0
  %1063 = vmatpush1.xpose.msra.mxu0 %v305
  %1064 = vmatprep.subr.mxu0 0.0
  %1065 = vmatpush1.xpose.msra.mxu0 %v302
  %1066 = vmatprep.subr.mxu0 0.0
  %1067 = vmatpush1.xpose.msra.mxu0 %v299
  %1068 = vmatprep.subr.mxu0 0.0
  %1069 = vmatpush1.xpose.msra.mxu0 %v296
  %1070 = vmatprep.subr.mxu0 0.0
  %1071 = vmatpush1.xpose.msra.mxu0 %v293
  %1072 = vmatprep.subr.mxu0 0.0
  %1073 = vmatpush1.xpose.msra.mxu0 %v290
  %1074 = vmatprep.subr.mxu0 0.0
  %1075 = vmatpush1.xpose.msra.mxu0 %v287
  %1076 = vmatprep.subr.mxu0 0.0
  %1077 = vmatpush1.xpose.msra.mxu0 %v284
  %1078 = vmatprep.subr.mxu0 0.0
  %1079 = vmatpush1.xpose.msra.mxu0 %v281
  %1080 = vmatprep.subr.mxu0 0.0
  %1081 = vmatpush2.xpose.msra.mxu0 %v374
  %1082 = vmatprep.subr.mxu0 0.0
  %1083 = vmatpush2.xpose.msra.mxu0 %v371
  %1084 = vmatprep.subr.mxu0 0.0
  %1085 = vmatpush2.xpose.msra.mxu0 %v368
  %1086 = vmatprep.subr.mxu0 0.0
  %1087 = vmatpush2.xpose.msra.mxu0 %v365
  %1088 = vmatprep.subr.mxu0 0.0
  %1089 = vmatpush2.xpose.msra.mxu0 %v362
  %1090 = vmatprep.subr.mxu0 0.0
  %1091 = vmatpush2.xpose.msra.mxu0 %v359
  %1092 = vmatprep.subr.mxu0 0.0
  %1093 = vmatpush2.xpose.msra.mxu0 %v356
  %1094 = vmatprep.subr.mxu0 0.0
  %1095 = vmatpush2.xpose.msra.mxu0 %v353
  %1096 = vmatprep.subr.mxu0 0.0
  %1097 = vmatpush2.xpose.msra.mxu0 %v350
  %1098 = vmatprep.subr.mxu0 0.0
  %1099 = vmatpush2.xpose.msra.mxu0 %v347
  %1100 = vmatprep.subr.mxu0 0.0
  %1101 = vmatpush2.xpose.msra.mxu0 %v344
  %1102 = vmatprep.subr.mxu0 0.0
  %1103 = vmatpush2.xpose.msra.mxu0 %v341
  %1104 = vmatprep.subr.mxu0 0.0
  %1105 = vmatpush2.xpose.msra.mxu0 %v338
  %1106 = vmatprep.subr.mxu0 0.0
  %1107 = vmatpush2.xpose.msra.mxu0 %v335
  %1108 = vmatprep.subr.mxu0 0.0
  %1109 = vmatpush2.xpose.msra.mxu0 %v332
  %1110 = vmatprep.subr.mxu0 0.0
  %1111 = vmatpush2.xpose.msra.mxu0 %v329
  %1112 = vmatprep.mubr.f32.mxu0 0.0
  %1113 = vmatmul.mubr.f32.gmra.mxu0 %v278
  %v1114 = vpop.f32.mrf.mxu0
  %v1115 = vadd.f32 %v275, %v1114
  %v1116 = vpop.f32.mrf.mxu0
  %v1117 = vadd.f32 %v275, %v1116
  %1118 = vdwg.mxu0
  %1119 = vmatprep.subr.mxu0 0.0
  %1120 = vmatpush1.xpose.msra.mxu0 %v422
  %1121 = vmatprep.subr.mxu0 0.0
  %1122 = vmatpush1.xpose.msra.mxu0 %v419
  %1123 = vmatprep.subr.mxu0 0.0
  %1124 = vmatpush1.xpose.msra.mxu0 %v416
  %1125 = vmatprep.subr.mxu0 0.0
  %1126 = vmatpush1.xpose.msra.mxu0 %v413
  %1127 = vmatprep.subr.mxu0 0.0
  %1128 = vmatpush1.xpose.msra.mxu0 %v410
  %1129 = vmatprep.subr.mxu0 0.0
  %1130 = vmatpush1.xpose.msra.mxu0 %v407
  %1131 = vmatprep.subr.mxu0 0.0
  %1132 = vmatpush1.xpose.msra.mxu0 %v404
  %1133 = vmatprep.subr.mxu0 0.0
  %1134 = vmatpush1.xpose.msra.mxu0 %v401
  %1135 = vmatprep.subr.mxu0 0.0
  %1136 = vmatpush1.xpose.msra.mxu0 %v398
  %1137 = vmatprep.subr.mxu0 0.0
  %1138 = vmatpush1.xpose.msra.mxu0 %v395
  %1139 = vmatprep.subr.mxu0 0.0
  %1140 = vmatpush1.xpose.msra.mxu0 %v392
  %1141 = vmatprep.subr.mxu0 0.0
  %1142 = vmatpush1.xpose.msra.mxu0 %v389
  %1143 = vmatprep.subr.mxu0 0.0
  %1144 = vmatpush1.xpose.msra.mxu0 %v386
  %1145 = vmatprep.subr.mxu0 0.0
  %1146 = vmatpush1.xpose.msra.mxu0 %v383
  %1147 = vmatprep.subr.mxu0 0.0
  %1148 = vmatpush1.xpose.msra.mxu0 %v380
  %1149 = vmatprep.subr.mxu0 0.0
  %1150 = vmatpush1.xpose.msra.mxu0 %v377
  %1151 = vmatprep.subr.mxu0 0.0
  %1152 = vmatpush2.xpose.msra.mxu0 %v470
  %1153 = vmatprep.subr.mxu0 0.0
  %1154 = vmatpush2.xpose.msra.mxu0 %v467
  %1155 = vmatprep.subr.mxu0 0.0
  %1156 = vmatpush2.xpose.msra.mxu0 %v464
  %1157 = vmatprep.subr.mxu0 0.0
  %1158 = vmatpush2.xpose.msra.mxu0 %v461
  %1159 = vmatprep.subr.mxu0 0.0
  %1160 = vmatpush2.xpose.msra.mxu0 %v458
  %1161 = vmatprep.subr.mxu0 0.0
  %1162 = vmatpush2.xpose.msra.mxu0 %v455
  %1163 = vmatprep.subr.mxu0 0.0
  %1164 = vmatpush2.xpose.msra.mxu0 %v452
  %1165 = vmatprep.subr.mxu0 0.0
  %1166 = vmatpush2.xpose.msra.mxu0 %v449
  %1167 = vmatprep.subr.mxu0 0.0
  %1168 = vmatpush2.xpose.msra.mxu0 %v446
  %1169 = vmatprep.subr.mxu0 0.0
  %1170 = vmatpush2.xpose.msra.mxu0 %v443
  %1171 = vmatprep.subr.mxu0 0.0
  %1172 = vmatpush2.xpose.msra.mxu0 %v440
  %1173 = vmatprep.subr.mxu0 0.0
  %1174 = vmatpush2.xpose.msra.mxu0 %v437
  %1175 = vmatprep.subr.mxu0 0.0
  %1176 = vmatpush2.xpose.msra.mxu0 %v434
  %1177 = vmatprep.subr.mxu0 0.0
  %1178 = vmatpush2.xpose.msra.mxu0 %v431
  %1179 = vmatprep.subr.mxu0 0.0
  %1180 = vmatpush2.xpose.msra.mxu0 %v428
  %1181 = vmatprep.subr.mxu0 0.0
  %1182 = vmatpush2.xpose.msra.mxu0 %v425
  %1183 = vmatprep.mubr.f32.mxu0 0.0
  %1184 = vmatmul.mubr.f32.gmra.mxu0 %v278
  %v1185 = vpop.f32.mrf.mxu0
  %v1186 = vadd.f32 %v275, %v1185
  %v1187 = vpop.f32.mrf.mxu0
  %v1188 = vadd.f32 %v275, %v1187
  %1189 = vdwg.mxu0
  %1190 = vmatprep.subr.mxu0 0.0
  %1191 = vmatpush1.xpose.msra.mxu0 %v518
  %1192 = vmatprep.subr.mxu0 0.0
  %1193 = vmatpush1.xpose.msra.mxu0 %v515
  %1194 = vmatprep.subr.mxu0 0.0
  %1195 = vmatpush1.xpose.msra.mxu0 %v512
  %1196 = vmatprep.subr.mxu0 0.0
  %1197 = vmatpush1.xpose.msra.mxu0 %v509
  %1198 = vmatprep.subr.mxu0 0.0
  %1199 = vmatpush1.xpose.msra.mxu0 %v506
  %1200 = vmatprep.subr.mxu0 0.0
  %1201 = vmatpush1.xpose.msra.mxu0 %v503
  %1202 = vmatprep.subr.mxu0 0.0
  %1203 = vmatpush1.xpose.msra.mxu0 %v500
  %1204 = vmatprep.subr.mxu0 0.0
  %1205 = vmatpush1.xpose.msra.mxu0 %v497
  %1206 = vmatprep.subr.mxu0 0.0
  %1207 = vmatpush1.xpose.msra.mxu0 %v494
  %1208 = vmatprep.subr.mxu0 0.0
  %1209 = vmatpush1.xpose.msra.mxu0 %v491
  %1210 = vmatprep.subr.mxu0 0.0
  %1211 = vmatpush1.xpose.msra.mxu0 %v488
  %1212 = vmatprep.subr.mxu0 0.0
  %1213 = vmatpush1.xpose.msra.mxu0 %v485
  %1214 = vmatprep.subr.mxu0 0.0
  %1215 = vmatpush1.xpose.msra.mxu0 %v482
  %1216 = vmatprep.subr.mxu0 0.0
  %1217 = vmatpush1.xpose.msra.mxu0 %v479
  %1218 = vmatprep.subr.mxu0 0.0
  %1219 = vmatpush1.xpose.msra.mxu0 %v476
  %1220 = vmatprep.subr.mxu0 0.0
  %1221 = vmatpush1.xpose.msra.mxu0 %v473
  %1222 = vmatprep.subr.mxu0 0.0
  %1223 = vmatpush2.xpose.msra.mxu0 %v566
  %1224 = vmatprep.subr.mxu0 0.0
  %1225 = vmatpush2.xpose.msra.mxu0 %v563
  %1226 = vmatprep.subr.mxu0 0.0
  %1227 = vmatpush2.xpose.msra.mxu0 %v560
  %1228 = vmatprep.subr.mxu0 0.0
  %1229 = vmatpush2.xpose.msra.mxu0 %v557
  %1230 = vmatprep.subr.mxu0 0.0
  %1231 = vmatpush2.xpose.msra.mxu0 %v554
  %1232 = vmatprep.subr.mxu0 0.0
  %1233 = vmatpush2.xpose.msra.mxu0 %v551
  %1234 = vmatprep.subr.mxu0 0.0
  %1235 = vmatpush2.xpose.msra.mxu0 %v548
  %1236 = vmatprep.subr.mxu0 0.0
  %1237 = vmatpush2.xpose.msra.mxu0 %v545
  %1238 = vmatprep.subr.mxu0 0.0
  %1239 = vmatpush2.xpose.msra.mxu0 %v542
  %1240 = vmatprep.subr.mxu0 0.0
  %1241 = vmatpush2.xpose.msra.mxu0 %v539
  %1242 = vmatprep.subr.mxu0 0.0
  %1243 = vmatpush2.xpose.msra.mxu0 %v536
  %1244 = vmatprep.subr.mxu0 0.0
  %1245 = vmatpush2.xpose.msra.mxu0 %v533
  %1246 = vmatprep.subr.mxu0 0.0
  %1247 = vmatpush2.xpose.msra.mxu0 %v530
  %1248 = vmatprep.subr.mxu0 0.0
  %1249 = vmatpush2.xpose.msra.mxu0 %v527
  %1250 = vmatprep.subr.mxu0 0.0
  %1251 = vmatpush2.xpose.msra.mxu0 %v524
  %1252 = vmatprep.subr.mxu0 0.0
  %1253 = vmatpush2.xpose.msra.mxu0 %v521
  %1254 = vmatprep.mubr.f32.mxu0 0.0
  %1255 = vmatmul.mubr.f32.gmra.mxu0 %v278
  %v1256 = vpop.f32.mrf.mxu0
  %v1257 = vadd.f32 %v275, %v1256
  %v1258 = vpop.f32.mrf.mxu0
  %v1259 = vadd.f32 %v275, %v1258
  %1260 = vdwg.mxu0
  %1261 = vmatprep.subr.mxu0 0.0
  %1262 = vmatpush1.xpose.msra.mxu0 %v614
  %1263 = vmatprep.subr.mxu0 0.0
  %1264 = vmatpush1.xpose.msra.mxu0 %v611
  %1265 = vmatprep.subr.mxu0 0.0
  %1266 = vmatpush1.xpose.msra.mxu0 %v608
  %1267 = vmatprep.subr.mxu0 0.0
  %1268 = vmatpush1.xpose.msra.mxu0 %v605
  %1269 = vmatprep.subr.mxu0 0.0
  %1270 = vmatpush1.xpose.msra.mxu0 %v602
  %1271 = vmatprep.subr.mxu0 0.0
  %1272 = vmatpush1.xpose.msra.mxu0 %v599
  %1273 = vmatprep.subr.mxu0 0.0
  %1274 = vmatpush1.xpose.msra.mxu0 %v596
  %1275 = vmatprep.subr.mxu0 0.0
  %1276 = vmatpush1.xpose.msra.mxu0 %v593
  %1277 = vmatprep.subr.mxu0 0.0
  %1278 = vmatpush1.xpose.msra.mxu0 %v590
  %1279 = vmatprep.subr.mxu0 0.0
  %1280 = vmatpush1.xpose.msra.mxu0 %v587
  %1281 = vmatprep.subr.mxu0 0.0
  %1282 = vmatpush1.xpose.msra.mxu0 %v584
  %1283 = vmatprep.subr.mxu0 0.0
  %1284 = vmatpush1.xpose.msra.mxu0 %v581
  %1285 = vmatprep.subr.mxu0 0.0
  %1286 = vmatpush1.xpose.msra.mxu0 %v578
  %1287 = vmatprep.subr.mxu0 0.0
  %1288 = vmatpush1.xpose.msra.mxu0 %v575
  %1289 = vmatprep.subr.mxu0 0.0
  %1290 = vmatpush1.xpose.msra.mxu0 %v572
  %1291 = vmatprep.subr.mxu0 0.0
  %1292 = vmatpush1.xpose.msra.mxu0 %v569
  %1293 = vmatprep.subr.mxu0 0.0
  %1294 = vmatpush2.xpose.msra.mxu0 %v662
  %1295 = vmatprep.subr.mxu0 0.0
  %1296 = vmatpush2.xpose.msra.mxu0 %v659
  %1297 = vmatprep.subr.mxu0 0.0
  %1298 = vmatpush2.xpose.msra.mxu0 %v656
  %1299 = vmatprep.subr.mxu0 0.0
  %1300 = vmatpush2.xpose.msra.mxu0 %v653
  %1301 = vmatprep.subr.mxu0 0.0
  %1302 = vmatpush2.xpose.msra.mxu0 %v650
  %1303 = vmatprep.subr.mxu0 0.0
  %1304 = vmatpush2.xpose.msra.mxu0 %v647
  %1305 = vmatprep.subr.mxu0 0.0
  %1306 = vmatpush2.xpose.msra.mxu0 %v644
  %1307 = vmatprep.subr.mxu0 0.0
  %1308 = vmatpush2.xpose.msra.mxu0 %v641
  %1309 = vmatprep.subr.mxu0 0.0
  %1310 = vmatpush2.xpose.msra.mxu0 %v638
  %1311 = vmatprep.subr.mxu0 0.0
  %1312 = vmatpush2.xpose.msra.mxu0 %v635
  %1313 = vmatprep.subr.mxu0 0.0
  %1314 = vmatpush2.xpose.msra.mxu0 %v632
  %1315 = vmatprep.subr.mxu0 0.0
  %1316 = vmatpush2.xpose.msra.mxu0 %v629
  %1317 = vmatprep.subr.mxu0 0.0
  %1318 = vmatpush2.xpose.msra.mxu0 %v626
  %1319 = vmatprep.subr.mxu0 0.0
  %1320 = vmatpush2.xpose.msra.mxu0 %v623
  %1321 = vmatprep.subr.mxu0 0.0
  %1322 = vmatpush2.xpose.msra.mxu0 %v620
  %1323 = vmatprep.subr.mxu0 0.0
  %1324 = vmatpush2.xpose.msra.mxu0 %v617
  %1325 = vmatprep.mubr.f32.mxu0 0.0
  %1326 = vmatmul.mubr.f32.gmra.mxu0 %v278
  %v1327 = vpop.f32.mrf.mxu0
  %v1328 = vadd.f32 %v275, %v1327
  %v1329 = vpop.f32.mrf.mxu0
  %v1330 = vadd.f32 %v275, %v1329
  %1331 = vdwg.mxu0
  %1332 = vmatprep.subr.mxu0 0.0
  %1333 = vmatpush1.xpose.msra.mxu0 %v710
  %1334 = vmatprep.subr.mxu0 0.0
  %1335 = vmatpush1.xpose.msra.mxu0 %v707
  %1336 = vmatprep.subr.mxu0 0.0
  %1337 = vmatpush1.xpose.msra.mxu0 %v704
  %1338 = vmatprep.subr.mxu0 0.0
  %1339 = vmatpush1.xpose.msra.mxu0 %v701
  %1340 = vmatprep.subr.mxu0 0.0
  %1341 = vmatpush1.xpose.msra.mxu0 %v698
  %1342 = vmatprep.subr.mxu0 0.0
  %1343 = vmatpush1.xpose.msra.mxu0 %v695
  %1344 = vmatprep.subr.mxu0 0.0
  %1345 = vmatpush1.xpose.msra.mxu0 %v692
  %1346 = vmatprep.subr.mxu0 0.0
  %1347 = vmatpush1.xpose.msra.mxu0 %v689
  %1348 = vmatprep.subr.mxu0 0.0
  %1349 = vmatpush1.xpose.msra.mxu0 %v686
  %1350 = vmatprep.subr.mxu0 0.0
  %1351 = vmatpush1.xpose.msra.mxu0 %v683
  %1352 = vmatprep.subr.mxu0 0.0
  %1353 = vmatpush1.xpose.msra.mxu0 %v680
  %1354 = vmatprep.subr.mxu0 0.0
  %1355 = vmatpush1.xpose.msra.mxu0 %v677
  %1356 = vmatprep.subr.mxu0 0.0
  %1357 = vmatpush1.xpose.msra.mxu0 %v674
  %1358 = vmatprep.subr.mxu0 0.0
  %1359 = vmatpush1.xpose.msra.mxu0 %v671
  %1360 = vmatprep.subr.mxu0 0.0
  %1361 = vmatpush1.xpose.msra.mxu0 %v668
  %1362 = vmatprep.subr.mxu0 0.0
  %1363 = vmatpush1.xpose.msra.mxu0 %v665
  %1364 = vmatprep.subr.mxu0 0.0
  %1365 = vmatpush2.xpose.msra.mxu0 %v758
  %1366 = vmatprep.subr.mxu0 0.0
  %1367 = vmatpush2.xpose.msra.mxu0 %v755
  %1368 = vmatprep.subr.mxu0 0.0
  %1369 = vmatpush2.xpose.msra.mxu0 %v752
  %1370 = vmatprep.subr.mxu0 0.0
  %1371 = vmatpush2.xpose.msra.mxu0 %v749
  %1372 = vmatprep.subr.mxu0 0.0
  %1373 = vmatpush2.xpose.msra.mxu0 %v746
  %1374 = vmatprep.subr.mxu0 0.0
  %1375 = vmatpush2.xpose.msra.mxu0 %v743
  %1376 = vmatprep.subr.mxu0 0.0
  %1377 = vmatpush2.xpose.msra.mxu0 %v740
  %1378 = vmatprep.subr.mxu0 0.0
  %1379 = vmatpush2.xpose.msra.mxu0 %v737
  %1380 = vmatprep.subr.mxu0 0.0
  %1381 = vmatpush2.xpose.msra.mxu0 %v734
  %1382 = vmatprep.subr.mxu0 0.0
  %1383 = vmatpush2.xpose.msra.mxu0 %v731
  %1384 = vmatprep.subr.mxu0 0.0
  %1385 = vmatpush2.xpose.msra.mxu0 %v728
  %1386 = vmatprep.subr.mxu0 0.0
  %1387 = vmatpush2.xpose.msra.mxu0 %v725
  %1388 = vmatprep.subr.mxu0 0.0
  %1389 = vmatpush2.xpose.msra.mxu0 %v722
  %1390 = vmatprep.subr.mxu0 0.0
  %1391 = vmatpush2.xpose.msra.mxu0 %v719
  %1392 = vmatprep.subr.mxu0 0.0
  %1393 = vmatpush2.xpose.msra.mxu0 %v716
  %1394 = vmatprep.subr.mxu0 0.0
  %1395 = vmatpush2.xpose.msra.mxu0 %v713
  %1396 = vmatprep.mubr.f32.mxu0 0.0
  %1397 = vmatmul.mubr.f32.gmra.mxu0 %v278
  %v1398 = vpop.f32.mrf.mxu0
  %v1399 = vadd.f32 %v275, %v1398
  %v1400 = vpop.f32.mrf.mxu0
  %v1401 = vadd.f32 %v275, %v1400
  %1402 = vdwg.mxu0
  %1403 = vmatprep.subr.mxu0 0.0
  %1404 = vmatpush1.xpose.msra.mxu0 %v806
  %1405 = vmatprep.subr.mxu0 0.0
  %1406 = vmatpush1.xpose.msra.mxu0 %v803
  %1407 = vmatprep.subr.mxu0 0.0
  %1408 = vmatpush1.xpose.msra.mxu0 %v800
  %1409 = vmatprep.subr.mxu0 0.0
  %1410 = vmatpush1.xpose.msra.mxu0 %v797
  %1411 = vmatprep.subr.mxu0 0.0
  %1412 = vmatpush1.xpose.msra.mxu0 %v794
  %1413 = vmatprep.subr.mxu0 0.0
  %1414 = vmatpush1.xpose.msra.mxu0 %v791
  %1415 = vmatprep.subr.mxu0 0.0
  %1416 = vmatpush1.xpose.msra.mxu0 %v788
  %1417 = vmatprep.subr.mxu0 0.0
  %1418 = vmatpush1.xpose.msra.mxu0 %v785
  %1419 = vmatprep.subr.mxu0 0.0
  %1420 = vmatpush1.xpose.msra.mxu0 %v782
  %1421 = vmatprep.subr.mxu0 0.0
  %1422 = vmatpush1.xpose.msra.mxu0 %v779
  %1423 = vmatprep.subr.mxu0 0.0
  %1424 = vmatpush1.xpose.msra.mxu0 %v776
  %1425 = vmatprep.subr.mxu0 0.0
  %1426 = vmatpush1.xpose.msra.mxu0 %v773
  %1427 = vmatprep.subr.mxu0 0.0
  %1428 = vmatpush1.xpose.msra.mxu0 %v770
  %1429 = vmatprep.subr.mxu0 0.0
  %1430 = vmatpush1.xpose.msra.mxu0 %v767
  %1431 = vmatprep.subr.mxu0 0.0
  %1432 = vmatpush1.xpose.msra.mxu0 %v764
  %1433 = vmatprep.subr.mxu0 0.0
  %1434 = vmatpush1.xpose.msra.mxu0 %v761
  %1435 = vmatprep.subr.mxu0 0.0
  %1436 = vmatpush2.xpose.msra.mxu0 %v854
  %1437 = vmatprep.subr.mxu0 0.0
  %1438 = vmatpush2.xpose.msra.mxu0 %v851
  %1439 = vmatprep.subr.mxu0 0.0
  %1440 = vmatpush2.xpose.msra.mxu0 %v848
  %1441 = vmatprep.subr.mxu0 0.0
  %1442 = vmatpush2.xpose.msra.mxu0 %v845
  %1443 = vmatprep.subr.mxu0 0.0
  %1444 = vmatpush2.xpose.msra.mxu0 %v842
  %1445 = vmatprep.subr.mxu0 0.0
  %1446 = vmatpush2.xpose.msra.mxu0 %v839
  %1447 = vmatprep.subr.mxu0 0.0
  %1448 = vmatpush2.xpose.msra.mxu0 %v836
  %1449 = vmatprep.subr.mxu0 0.0
  %1450 = vmatpush2.xpose.msra.mxu0 %v833
  %1451 = vmatprep.subr.mxu0 0.0
  %1452 = vmatpush2.xpose.msra.mxu0 %v830
  %1453 = vmatprep.subr.mxu0 0.0
  %1454 = vmatpush2.xpose.msra.mxu0 %v827
  %1455 = vmatprep.subr.mxu0 0.0
  %1456 = vmatpush2.xpose.msra.mxu0 %v824
  %1457 = vmatprep.subr.mxu0 0.0
  %1458 = vmatpush2.xpose.msra.mxu0 %v821
  %1459 = vmatprep.subr.mxu0 0.0
  %1460 = vmatpush2.xpose.msra.mxu0 %v818
  %1461 = vmatprep.subr.mxu0 0.0
  %1462 = vmatpush2.xpose.msra.mxu0 %v815
  %1463 = vmatprep.subr.mxu0 0.0
  %1464 = vmatpush2.xpose.msra.mxu0 %v812
  %1465 = vmatprep.subr.mxu0 0.0
  %1466 = vmatpush2.xpose.msra.mxu0 %v809
  %1467 = vmatprep.mubr.f32.mxu0 0.0
  %1468 = vmatmul.mubr.f32.gmra.mxu0 %v278
  %v1469 = vpop.f32.mrf.mxu0
  %v1470 = vadd.f32 %v275, %v1469
  %v1471 = vpop.f32.mrf.mxu0
  %v1472 = vadd.f32 %v275, %v1471
  %1473 = vdwg.mxu0
  %1474 = vmatprep.subr.mxu0 0.0
  %1475 = vmatpush1.xpose.msra.mxu0 %v902
  %1476 = vmatprep.subr.mxu0 0.0
  %1477 = vmatpush1.xpose.msra.mxu0 %v899
  %1478 = vmatprep.subr.mxu0 0.0
  %1479 = vmatpush1.xpose.msra.mxu0 %v896
  %1480 = vmatprep.subr.mxu0 0.0
  %1481 = vmatpush1.xpose.msra.mxu0 %v893
  %1482 = vmatprep.subr.mxu0 0.0
  %1483 = vmatpush1.xpose.msra.mxu0 %v890
  %1484 = vmatprep.subr.mxu0 0.0
  %1485 = vmatpush1.xpose.msra.mxu0 %v887
  %1486 = vmatprep.subr.mxu0 0.0
  %1487 = vmatpush1.xpose.msra.mxu0 %v884
  %1488 = vmatprep.subr.mxu0 0.0
  %1489 = vmatpush1.xpose.msra.mxu0 %v881
  %1490 = vmatprep.subr.mxu0 0.0
  %1491 = vmatpush1.xpose.msra.mxu0 %v878
  %1492 = vmatprep.subr.mxu0 0.0
  %1493 = vmatpush1.xpose.msra.mxu0 %v875
  %1494 = vmatprep.subr.mxu0 0.0
  %1495 = vmatpush1.xpose.msra.mxu0 %v872
  %1496 = vmatprep.subr.mxu0 0.0
  %1497 = vmatpush1.xpose.msra.mxu0 %v869
  %1498 = vmatprep.subr.mxu0 0.0
  %1499 = vmatpush1.xpose.msra.mxu0 %v866
  %1500 = vmatprep.subr.mxu0 0.0
  %1501 = vmatpush1.xpose.msra.mxu0 %v863
  %1502 = vmatprep.subr.mxu0 0.0
  %1503 = vmatpush1.xpose.msra.mxu0 %v860
  %1504 = vmatprep.subr.mxu0 0.0
  %1505 = vmatpush1.xpose.msra.mxu0 %v857
  %1506 = vmatprep.subr.mxu0 0.0
  %1507 = vmatpush2.xpose.msra.mxu0 %v950
  %1508 = vmatprep.subr.mxu0 0.0
  %1509 = vmatpush2.xpose.msra.mxu0 %v947
  %1510 = vmatprep.subr.mxu0 0.0
  %1511 = vmatpush2.xpose.msra.mxu0 %v944
  %1512 = vmatprep.subr.mxu0 0.0
  %1513 = vmatpush2.xpose.msra.mxu0 %v941
  %1514 = vmatprep.subr.mxu0 0.0
  %1515 = vmatpush2.xpose.msra.mxu0 %v938
  %1516 = vmatprep.subr.mxu0 0.0
  %1517 = vmatpush2.xpose.msra.mxu0 %v935
  %1518 = vmatprep.subr.mxu0 0.0
  %1519 = vmatpush2.xpose.msra.mxu0 %v932
  %1520 = vmatprep.subr.mxu0 0.0
  %1521 = vmatpush2.xpose.msra.mxu0 %v929
  %1522 = vmatprep.subr.mxu0 0.0
  %1523 = vmatpush2.xpose.msra.mxu0 %v926
  %1524 = vmatprep.subr.mxu0 0.0
  %1525 = vmatpush2.xpose.msra.mxu0 %v923
  %1526 = vmatprep.subr.mxu0 0.0
  %1527 = vmatpush2.xpose.msra.mxu0 %v920
  %1528 = vmatprep.subr.mxu0 0.0
  %1529 = vmatpush2.xpose.msra.mxu0 %v917
  %1530 = vmatprep.subr.mxu0 0.0
  %1531 = vmatpush2.xpose.msra.mxu0 %v914
  %1532 = vmatprep.subr.mxu0 0.0
  %1533 = vmatpush2.xpose.msra.mxu0 %v911
  %1534 = vmatprep.subr.mxu0 0.0
  %1535 = vmatpush2.xpose.msra.mxu0 %v908
  %1536 = vmatprep.subr.mxu0 0.0
  %1537 = vmatpush2.xpose.msra.mxu0 %v905
  %1538 = vmatprep.mubr.f32.mxu0 0.0
  %1539 = vmatmul.mubr.f32.gmra.mxu0 %v278
  %v1540 = vpop.f32.mrf.mxu0
  %v1541 = vadd.f32 %v275, %v1540
  %v1542 = vpop.f32.mrf.mxu0
  %v1543 = vadd.f32 %v275, %v1542
  %1544 = vdwg.mxu0
  %1545 = vmatprep.subr.mxu0 0.0
  %1546 = vmatpush1.xpose.msra.mxu0 %v998
  %1547 = vmatprep.subr.mxu0 0.0
  %1548 = vmatpush1.xpose.msra.mxu0 %v995
  %1549 = vmatprep.subr.mxu0 0.0
  %1550 = vmatpush1.xpose.msra.mxu0 %v992
  %1551 = vmatprep.subr.mxu0 0.0
  %1552 = vmatpush1.xpose.msra.mxu0 %v989
  %1553 = vmatprep.subr.mxu0 0.0
  %1554 = vmatpush1.xpose.msra.mxu0 %v986
  %1555 = vmatprep.subr.mxu0 0.0
  %1556 = vmatpush1.xpose.msra.mxu0 %v983
  %1557 = vmatprep.subr.mxu0 0.0
  %1558 = vmatpush1.xpose.msra.mxu0 %v980
  %1559 = vmatprep.subr.mxu0 0.0
  %1560 = vmatpush1.xpose.msra.mxu0 %v977
  %1561 = vmatprep.subr.mxu0 0.0
  %1562 = vmatpush1.xpose.msra.mxu0 %v974
  %1563 = vmatprep.subr.mxu0 0.0
  %1564 = vmatpush1.xpose.msra.mxu0 %v971
  %1565 = vmatprep.subr.mxu0 0.0
  %1566 = vmatpush1.xpose.msra.mxu0 %v968
  %1567 = vmatprep.subr.mxu0 0.0
  %1568 = vmatpush1.xpose.msra.mxu0 %v965
  %1569 = vmatprep.subr.mxu0 0.0
  %1570 = vmatpush1.xpose.msra.mxu0 %v962
  %1571 = vmatprep.subr.mxu0 0.0
  %1572 = vmatpush1.xpose.msra.mxu0 %v959
  %1573 = vmatprep.subr.mxu0 0.0
  %1574 = vmatpush1.xpose.msra.mxu0 %v956
  %1575 = vmatprep.subr.mxu0 0.0
  %1576 = vmatpush1.xpose.msra.mxu0 %v953
  %1577 = vmatprep.subr.mxu0 0.0
  %1578 = vmatpush2.xpose.msra.mxu0 %v1046
  %1579 = vmatprep.subr.mxu0 0.0
  %1580 = vmatpush2.xpose.msra.mxu0 %v1043
  %1581 = vmatprep.subr.mxu0 0.0
  %1582 = vmatpush2.xpose.msra.mxu0 %v1040
  %1583 = vmatprep.subr.mxu0 0.0
  %1584 = vmatpush2.xpose.msra.mxu0 %v1037
  %1585 = vmatprep.subr.mxu0 0.0
  %1586 = vmatpush2.xpose.msra.mxu0 %v1034
  %1587 = vmatprep.subr.mxu0 0.0
  %1588 = vmatpush2.xpose.msra.mxu0 %v1031
  %1589 = vmatprep.subr.mxu0 0.0
  %1590 = vmatpush2.xpose.msra.mxu0 %v1028
  %1591 = vmatprep.subr.mxu0 0.0
  %1592 = vmatpush2.xpose.msra.mxu0 %v1025
  %1593 = vmatprep.subr.mxu0 0.0
  %1594 = vmatpush2.xpose.msra.mxu0 %v1022
  %1595 = vmatprep.subr.mxu0 0.0
  %1596 = vmatpush2.xpose.msra.mxu0 %v1019
  %1597 = vmatprep.subr.mxu0 0.0
  %1598 = vmatpush2.xpose.msra.mxu0 %v1016
  %1599 = vmatprep.subr.mxu0 0.0
  %1600 = vmatpush2.xpose.msra.mxu0 %v1013
  %1601 = vmatprep.subr.mxu0 0.0
  %1602 = vmatpush2.xpose.msra.mxu0 %v1010
  %1603 = vmatprep.subr.mxu0 0.0
  %1604 = vmatpush2.xpose.msra.mxu0 %v1007
  %1605 = vmatprep.subr.mxu0 0.0
  %1606 = vmatpush2.xpose.msra.mxu0 %v1004
  %1607 = vmatprep.subr.mxu0 0.0
  %1608 = vmatpush2.xpose.msra.mxu0 %v1001
  %1609 = vmatprep.mubr.f32.mxu0 0.0
  %1610 = vmatmul.mubr.f32.gmra.mxu0 %v278
  %v1611 = vpop.f32.mrf.mxu0
  %v1612 = vadd.f32 %v275, %v1611
  %v1613 = vpop.f32.mrf.mxu0
  %v1614 = vadd.f32 %v275, %v1613
  %1615 = vdwg.mxu0
  %v1616 = vmax.f32 %v1115, 0.0
  %v1617 = vmax.f32 %v1117, 0.0
  %v1618 = vmax.f32 %v1186, 0.0
  %v1619 = vmax.f32 %v1188, 0.0
  %v1620 = vmax.f32 %v1257, 0.0
  %v1621 = vmax.f32 %v1259, 0.0
  %v1622 = vmax.f32 %v1328, 0.0
  %v1623 = vmax.f32 %v1330, 0.0
  %v1624 = vmax.f32 %v1399, 0.0
  %v1625 = vmax.f32 %v1401, 0.0
  %v1626 = vmax.f32 %v1470, 0.0
  %v1627 = vmax.f32 %v1472, 0.0
  %v1628 = vmax.f32 %v1541, 0.0
  %v1629 = vmax.f32 %v1543, 0.0
  %v1630 = vmax.f32 %v1612, 0.0
  %v1631 = vmax.f32 %v1614, 0.0
  %1633 = vset.pattern.permute.xlu0 8
  %1634 = vperm.xlu0 %1633, %v271
  %v1635 = vpop.permute.xlu0 %1634
  %vm1637 = vcmask 64512
  %v1638 = vsel %vm1637, %v271, 0
  %1640 = vmatprep.subr.mxu0 0.0
  %1641 = vmatpush1.msra.mxu0 0.0
  %1642 = vmatprep.subr.mxu0 0.0
  %1643 = vmatpush1.msra.mxu0 0.0
  %1644 = vmatprep.subr.mxu0 0.0
  %1645 = vmatpush1.msra.mxu0 0.0
  %1646 = vmatprep.subr.mxu0 0.0
  %1647 = vmatpush1.msra.mxu0 0.0
  %1648 = vmatprep.subr.mxu0 0.0
  %1649 = vmatpush1.msra.mxu0 0.0
  %1650 = vmatprep.subr.mxu0 0.0
  %1651 = vmatpush1.msra.mxu0 0.0
  %1652 = vmatprep.subr.mxu0 0.0
  %1653 = vmatpush1.msra.mxu0 0.0
  %1654 = vmatprep.subr.mxu0 0.0
  %1655 = vmatpush1.msra.mxu0 0.0
  %1656 = vmatprep.subr.mxu0 0.0
  %1657 = vmatpush1.msra.mxu0 0.0
  %1658 = vmatprep.subr.mxu0 0.0
  %1659 = vmatpush1.msra.mxu0 0.0
  %1660 = vmatprep.subr.mxu0 0.0
  %1661 = vmatpush1.msra.mxu0 0.0
  %1662 = vmatprep.subr.mxu0 0.0
  %1663 = vmatpush1.msra.mxu0 0.0
  %1664 = vmatprep.subr.mxu0 0.0
  %1665 = vmatpush1.msra.mxu0 0.0
  %1666 = vmatprep.subr.mxu0 0.0
  %1667 = vmatpush1.msra.mxu0 0.0
  %1668 = vmatprep.subr.mxu0 0.0
  %1669 = vmatpush1.msra.mxu0 0.0
  %1670 = vmatprep.subr.mxu0 %v1617
  %1671 = vmatpush1.msra.mxu0 %v1616
  %1672 = vmatprep.subr.mxu0 0.0
  %1673 = vmatpush2.msra.mxu0 0.0
  %1674 = vmatprep.subr.mxu0 0.0
  %1675 = vmatpush2.msra.mxu0 0.0
  %1676 = vmatprep.subr.mxu0 0.0
  %1677 = vmatpush2.msra.mxu0 0.0
  %1678 = vmatprep.subr.mxu0 0.0
  %1679 = vmatpush2.msra.mxu0 0.0
  %1680 = vmatprep.subr.mxu0 0.0
  %1681 = vmatpush2.msra.mxu0 0.0
  %1682 = vmatprep.subr.mxu0 0.0
  %1683 = vmatpush2.msra.mxu0 0.0
  %1684 = vmatprep.subr.mxu0 0.0
  %1685 = vmatpush2.msra.mxu0 0.0
  %1686 = vmatprep.subr.mxu0 0.0
  %1687 = vmatpush2.msra.mxu0 0.0
  %1688 = vmatprep.subr.mxu0 0.0
  %1689 = vmatpush2.msra.mxu0 0.0
  %1690 = vmatprep.subr.mxu0 0.0
  %1691 = vmatpush2.msra.mxu0 0.0
  %1692 = vmatprep.subr.mxu0 0.0
  %1693 = vmatpush2.msra.mxu0 0.0
  %1694 = vmatprep.subr.mxu0 0.0
  %1695 = vmatpush2.msra.mxu0 0.0
  %1696 = vmatprep.subr.mxu0 0.0
  %1697 = vmatpush2.msra.mxu0 0.0
  %1698 = vmatprep.subr.mxu0 0.0
  %1699 = vmatpush2.msra.mxu0 0.0
  %1700 = vmatprep.subr.mxu0 0.0
  %1701 = vmatpush2.msra.mxu0 0.0
  %1702 = vmatprep.subr.mxu0 0.0
  %1703 = vmatpush2.msra.mxu0 0.0
  %1704 = vmatprep.mubr.f32.mxu0 0.0
  %1705 = vmatmul.mubr.f32.gmra.mxu0 %v1638
  %v1706 = vpop.f32.mrf.mxu0
  %v1707 = vadd.f32 %v1635, %v1706
  %v1708 = vpop.f32.mrf.mxu0
  %v1709 = vadd.f32 %v1635, %v1708
  %1710 = vdwg.mxu0
  %1711 = vmatprep.subr.mxu0 0.0
  %1712 = vmatpush1.msra.mxu0 0.0
  %1713 = vmatprep.subr.mxu0 0.0
  %1714 = vmatpush1.msra.mxu0 0.0
  %1715 = vmatprep.subr.mxu0 0.0
  %1716 = vmatpush1.msra.mxu0 0.0
  %1717 = vmatprep.subr.mxu0 0.0
  %1718 = vmatpush1.msra.mxu0 0.0
  %1719 = vmatprep.subr.mxu0 0.0
  %1720 = vmatpush1.msra.mxu0 0.0
  %1721 = vmatprep.subr.mxu0 0.0
  %1722 = vmatpush1.msra.mxu0 0.0
  %1723 = vmatprep.subr.mxu0 0.0
  %1724 = vmatpush1.msra.mxu0 0.0
  %1725 = vmatprep.subr.mxu0 0.0
  %1726 = vmatpush1.msra.mxu0 0.0
  %1727 = vmatprep.subr.mxu0 0.0
  %1728 = vmatpush1.msra.mxu0 0.0
  %1729 = vmatprep.subr.mxu0 0.0
  %1730 = vmatpush1.msra.mxu0 0.0
  %1731 = vmatprep.subr.mxu0 0.0
  %1732 = vmatpush1.msra.mxu0 0.0
  %1733 = vmatprep.subr.mxu0 0.0
  %1734 = vmatpush1.msra.mxu0 0.0
  %1735 = vmatprep.subr.mxu0 0.0
  %1736 = vmatpush1.msra.mxu0 0.0
  %1737 = vmatprep.subr.mxu0 0.0
  %1738 = vmatpush1.msra.mxu0 0.0
  %1739 = vmatprep.subr.mxu0 0.0
  %1740 = vmatpush1.msra.mxu0 0.0
  %1741 = vmatprep.subr.mxu0 %v1619
  %1742 = vmatpush1.msra.mxu0 %v1618
  %1743 = vmatprep.subr.mxu0 0.0
  %1744 = vmatpush2.msra.mxu0 0.0
  %1745 = vmatprep.subr.mxu0 0.0
  %1746 = vmatpush2.msra.mxu0 0.0
  %1747 = vmatprep.subr.mxu0 0.0
  %1748 = vmatpush2.msra.mxu0 0.0
  %1749 = vmatprep.subr.mxu0 0.0
  %1750 = vmatpush2.msra.mxu0 0.0
  %1751 = vmatprep.subr.mxu0 0.0
  %1752 = vmatpush2.msra.mxu0 0.0
  %1753 = vmatprep.subr.mxu0 0.0
  %1754 = vmatpush2.msra.mxu0 0.0
  %1755 = vmatprep.subr.mxu0 0.0
  %1756 = vmatpush2.msra.mxu0 0.0
  %1757 = vmatprep.subr.mxu0 0.0
  %1758 = vmatpush2.msra.mxu0 0.0
  %1759 = vmatprep.subr.mxu0 0.0
  %1760 = vmatpush2.msra.mxu0 0.0
  %1761 = vmatprep.subr.mxu0 0.0
  %1762 = vmatpush2.msra.mxu0 0.0
  %1763 = vmatprep.subr.mxu0 0.0
  %1764 = vmatpush2.msra.mxu0 0.0
  %1765 = vmatprep.subr.mxu0 0.0
  %1766 = vmatpush2.msra.mxu0 0.0
  %1767 = vmatprep.subr.mxu0 0.0
  %1768 = vmatpush2.msra.mxu0 0.0
  %1769 = vmatprep.subr.mxu0 0.0
  %1770 = vmatpush2.msra.mxu0 0.0
  %1771 = vmatprep.subr.mxu0 0.0
  %1772 = vmatpush2.msra.mxu0 0.0
  %1773 = vmatprep.subr.mxu0 0.0
  %1774 = vmatpush2.msra.mxu0 0.0
  %1775 = vmatprep.mubr.f32.mxu0 0.0
  %1776 = vmatmul.mubr.f32.gmra.mxu0 %v1638
  %v1777 = vpop.f32.mrf.mxu0
  %v1778 = vadd.f32 %v1635, %v1777
  %v1779 = vpop.f32.mrf.mxu0
  %v1780 = vadd.f32 %v1635, %v1779
  %1781 = vdwg.mxu0
  %1782 = vmatprep.subr.mxu0 0.0
  %1783 = vmatpush1.msra.mxu0 0.0
  %1784 = vmatprep.subr.mxu0 0.0
  %1785 = vmatpush1.msra.mxu0 0.0
  %1786 = vmatprep.subr.mxu0 0.0
  %1787 = vmatpush1.msra.mxu0 0.0
  %1788 = vmatprep.subr.mxu0 0.0
  %1789 = vmatpush1.msra.mxu0 0.0
  %1790 = vmatprep.subr.mxu0 0.0
  %1791 = vmatpush1.msra.mxu0 0.0
  %1792 = vmatprep.subr.mxu0 0.0
  %1793 = vmatpush1.msra.mxu0 0.0
  %1794 = vmatprep.subr.mxu0 0.0
  %1795 = vmatpush1.msra.mxu0 0.0
  %1796 = vmatprep.subr.mxu0 0.0
  %1797 = vmatpush1.msra.mxu0 0.0
  %1798 = vmatprep.subr.mxu0 0.0
  %1799 = vmatpush1.msra.mxu0 0.0
  %1800 = vmatprep.subr.mxu0 0.0
  %1801 = vmatpush1.msra.mxu0 0.0
  %1802 = vmatprep.subr.mxu0 0.0
  %1803 = vmatpush1.msra.mxu0 0.0
  %1804 = vmatprep.subr.mxu0 0.0
  %1805 = vmatpush1.msra.mxu0 0.0
  %1806 = vmatprep.subr.mxu0 0.0
  %1807 = vmatpush1.msra.mxu0 0.0
  %1808 = vmatprep.subr.mxu0 0.0
  %1809 = vmatpush1.msra.mxu0 0.0
  %1810 = vmatprep.subr.mxu0 0.0
  %1811 = vmatpush1.msra.mxu0 0.0
  %1812 = vmatprep.subr.mxu0 %v1621
  %1813 = vmatpush1.msra.mxu0 %v1620
  %1814 = vmatprep.subr.mxu0 0.0
  %1815 = vmatpush2.msra.mxu0 0.0
  %1816 = vmatprep.subr.mxu0 0.0
  %1817 = vmatpush2.msra.mxu0 0.0
  %1818 = vmatprep.subr.mxu0 0.0
  %1819 = vmatpush2.msra.mxu0 0.0
  %1820 = vmatprep.subr.mxu0 0.0
  %1821 = vmatpush2.msra.mxu0 0.0
  %1822 = vmatprep.subr.mxu0 0.0
  %1823 = vmatpush2.msra.mxu0 0.0
  %1824 = vmatprep.subr.mxu0 0.0
  %1825 = vmatpush2.msra.mxu0 0.0
  %1826 = vmatprep.subr.mxu0 0.0
  %1827 = vmatpush2.msra.mxu0 0.0
  %1828 = vmatprep.subr.mxu0 0.0
  %1829 = vmatpush2.msra.mxu0 0.0
  %1830 = vmatprep.subr.mxu0 0.0
  %1831 = vmatpush2.msra.mxu0 0.0
  %1832 = vmatprep.subr.mxu0 0.0
  %1833 = vmatpush2.msra.mxu0 0.0
  %1834 = vmatprep.subr.mxu0 0.0
  %1835 = vmatpush2.msra.mxu0 0.0
  %1836 = vmatprep.subr.mxu0 0.0
  %1837 = vmatpush2.msra.mxu0 0.0
  %1838 = vmatprep.subr.mxu0 0.0
  %1839 = vmatpush2.msra.mxu0 0.0
  %1840 = vmatprep.subr.mxu0 0.0
  %1841 = vmatpush2.msra.mxu0 0.0
  %1842 = vmatprep.subr.mxu0 0.0
  %1843 = vmatpush2.msra.mxu0 0.0
  %1844 = vmatprep.subr.mxu0 0.0
  %1845 = vmatpush2.msra.mxu0 0.0
  %1846 = vmatprep.mubr.f32.mxu0 0.0
  %1847 = vmatmul.mubr.f32.gmra.mxu0 %v1638
  %v1848 = vpop.f32.mrf.mxu0
  %v1849 = vadd.f32 %v1635, %v1848
  %v1850 = vpop.f32.mrf.mxu0
  %v1851 = vadd.f32 %v1635, %v1850
  %1852 = vdwg.mxu0
  %1853 = vmatprep.subr.mxu0 0.0
  %1854 = vmatpush1.msra.mxu0 0.0
  %1855 = vmatprep.subr.mxu0 0.0
  %1856 = vmatpush1.msra.mxu0 0.0
  %1857 = vmatprep.subr.mxu0 0.0
  %1858 = vmatpush1.msra.mxu0 0.0
  %1859 = vmatprep.subr.mxu0 0.0
  %1860 = vmatpush1.msra.mxu0 0.0
  %1861 = vmatprep.subr.mxu0 0.0
  %1862 = vmatpush1.msra.mxu0 0.0
  %1863 = vmatprep.subr.mxu0 0.0
  %1864 = vmatpush1.msra.mxu0 0.0
  %1865 = vmatprep.subr.mxu0 0.0
  %1866 = vmatpush1.msra.mxu0 0.0
  %1867 = vmatprep.subr.mxu0 0.0
  %1868 = vmatpush1.msra.mxu0 0.0
  %1869 = vmatprep.subr.mxu0 0.0
  %1870 = vmatpush1.msra.mxu0 0.0
  %1871 = vmatprep.subr.mxu0 0.0
  %1872 = vmatpush1.msra.mxu0 0.0
  %1873 = vmatprep.subr.mxu0 0.0
  %1874 = vmatpush1.msra.mxu0 0.0
  %1875 = vmatprep.subr.mxu0 0.0
  %1876 = vmatpush1.msra.mxu0 0.0
  %1877 = vmatprep.subr.mxu0 0.0
  %1878 = vmatpush1.msra.mxu0 0.0
  %1879 = vmatprep.subr.mxu0 0.0
  %1880 = vmatpush1.msra.mxu0 0.0
  %1881 = vmatprep.subr.mxu0 0.0
  %1882 = vmatpush1.msra.mxu0 0.0
  %1883 = vmatprep.subr.mxu0 %v1623
  %1884 = vmatpush1.msra.mxu0 %v1622
  %1885 = vmatprep.subr.mxu0 0.0
  %1886 = vmatpush2.msra.mxu0 0.0
  %1887 = vmatprep.subr.mxu0 0.0
  %1888 = vmatpush2.msra.mxu0 0.0
  %1889 = vmatprep.subr.mxu0 0.0
  %1890 = vmatpush2.msra.mxu0 0.0
  %1891 = vmatprep.subr.mxu0 0.0
  %1892 = vmatpush2.msra.mxu0 0.0
  %1893 = vmatprep.subr.mxu0 0.0
  %1894 = vmatpush2.msra.mxu0 0.0
  %1895 = vmatprep.subr.mxu0 0.0
  %1896 = vmatpush2.msra.mxu0 0.0
  %1897 = vmatprep.subr.mxu0 0.0
  %1898 = vmatpush2.msra.mxu0 0.0
  %1899 = vmatprep.subr.mxu0 0.0
  %1900 = vmatpush2.msra.mxu0 0.0
  %1901 = vmatprep.subr.mxu0 0.0
  %1902 = vmatpush2.msra.mxu0 0.0
  %1903 = vmatprep.subr.mxu0 0.0
  %1904 = vmatpush2.msra.mxu0 0.0
  %1905 = vmatprep.subr.mxu0 0.0
  %1906 = vmatpush2.msra.mxu0 0.0
  %1907 = vmatprep.subr.mxu0 0.0
  %1908 = vmatpush2.msra.mxu0 0.0
  %1909 = vmatprep.subr.mxu0 0.0
  %1910 = vmatpush2.msra.mxu0 0.0
  %1911 = vmatprep.subr.mxu0 0.0
  %1912 = vmatpush2.msra.mxu0 0.0
  %1913 = vmatprep.subr.mxu0 0.0
  %1914 = vmatpush2.msra.mxu0 0.0
  %1915 = vmatprep.subr.mxu0 0.0
  %1916 = vmatpush2.msra.mxu0 0.0
  %1917 = vmatprep.mubr.f32.mxu0 0.0
  %1918 = vmatmul.mubr.f32.gmra.mxu0 %v1638
  %v1919 = vpop.f32.mrf.mxu0
  %v1920 = vadd.f32 %v1635, %v1919
  %v1921 = vpop.f32.mrf.mxu0
  %v1922 = vadd.f32 %v1635, %v1921
  %1923 = vdwg.mxu0
  %1924 = vmatprep.subr.mxu0 0.0
  %1925 = vmatpush1.msra.mxu0 0.0
  %1926 = vmatprep.subr.mxu0 0.0
  %1927 = vmatpush1.msra.mxu0 0.0
  %1928 = vmatprep.subr.mxu0 0.0
  %1929 = vmatpush1.msra.mxu0 0.0
  %1930 = vmatprep.subr.mxu0 0.0
  %1931 = vmatpush1.msra.mxu0 0.0
  %1932 = vmatprep.subr.mxu0 0.0
  %1933 = vmatpush1.msra.mxu0 0.0
  %1934 = vmatprep.subr.mxu0 0.0
  %1935 = vmatpush1.msra.mxu0 0.0
  %1936 = vmatprep.subr.mxu0 0.0
  %1937 = vmatpush1.msra.mxu0 0.0
  %1938 = vmatprep.subr.mxu0 0.0
  %1939 = vmatpush1.msra.mxu0 0.0
  %1940 = vmatprep.subr.mxu0 0.0
  %1941 = vmatpush1.msra.mxu0 0.0
  %1942 = vmatprep.subr.mxu0 0.0
  %1943 = vmatpush1.msra.mxu0 0.0
  %1944 = vmatprep.subr.mxu0 0.0
  %1945 = vmatpush1.msra.mxu0 0.0
  %1946 = vmatprep.subr.mxu0 0.0
  %1947 = vmatpush1.msra.mxu0 0.0
  %1948 = vmatprep.subr.mxu0 0.0
  %1949 = vmatpush1.msra.mxu0 0.0
  %1950 = vmatprep.subr.mxu0 0.0
  %1951 = vmatpush1.msra.mxu0 0.0
  %1952 = vmatprep.subr.mxu0 0.0
  %1953 = vmatpush1.msra.mxu0 0.0
  %1954 = vmatprep.subr.mxu0 %v1625
  %1955 = vmatpush1.msra.mxu0 %v1624
  %1956 = vmatprep.subr.mxu0 0.0
  %1957 = vmatpush2.msra.mxu0 0.0
  %1958 = vmatprep.subr.mxu0 0.0
  %1959 = vmatpush2.msra.mxu0 0.0
  %1960 = vmatprep.subr.mxu0 0.0
  %1961 = vmatpush2.msra.mxu0 0.0
  %1962 = vmatprep.subr.mxu0 0.0
  %1963 = vmatpush2.msra.mxu0 0.0
  %1964 = vmatprep.subr.mxu0 0.0
  %1965 = vmatpush2.msra.mxu0 0.0
  %1966 = vmatprep.subr.mxu0 0.0
  %1967 = vmatpush2.msra.mxu0 0.0
  %1968 = vmatprep.subr.mxu0 0.0
  %1969 = vmatpush2.msra.mxu0 0.0
  %1970 = vmatprep.subr.mxu0 0.0
  %1971 = vmatpush2.msra.mxu0 0.0
  %1972 = vmatprep.subr.mxu0 0.0
  %1973 = vmatpush2.msra.mxu0 0.0
  %1974 = vmatprep.subr.mxu0 0.0
  %1975 = vmatpush2.msra.mxu0 0.0
  %1976 = vmatprep.subr.mxu0 0.0
  %1977 = vmatpush2.msra.mxu0 0.0
  %1978 = vmatprep.subr.mxu0 0.0
  %1979 = vmatpush2.msra.mxu0 0.0
  %1980 = vmatprep.subr.mxu0 0.0
  %1981 = vmatpush2.msra.mxu0 0.0
  %1982 = vmatprep.subr.mxu0 0.0
  %1983 = vmatpush2.msra.mxu0 0.0
  %1984 = vmatprep.subr.mxu0 0.0
  %1985 = vmatpush2.msra.mxu0 0.0
  %1986 = vmatprep.subr.mxu0 0.0
  %1987 = vmatpush2.msra.mxu0 0.0
  %1988 = vmatprep.mubr.f32.mxu0 0.0
  %1989 = vmatmul.mubr.f32.gmra.mxu0 %v1638
  %v1990 = vpop.f32.mrf.mxu0
  %v1991 = vadd.f32 %v1635, %v1990
  %v1992 = vpop.f32.mrf.mxu0
  %v1993 = vadd.f32 %v1635, %v1992
  %1994 = vdwg.mxu0
  %1995 = vmatprep.subr.mxu0 0.0
  %1996 = vmatpush1.msra.mxu0 0.0
  %1997 = vmatprep.subr.mxu0 0.0
  %1998 = vmatpush1.msra.mxu0 0.0
  %1999 = vmatprep.subr.mxu0 0.0
  %2000 = vmatpush1.msra.mxu0 0.0
  %2001 = vmatprep.subr.mxu0 0.0
  %2002 = vmatpush1.msra.mxu0 0.0
  %2003 = vmatprep.subr.mxu0 0.0
  %2004 = vmatpush1.msra.mxu0 0.0
  %2005 = vmatprep.subr.mxu0 0.0
  %2006 = vmatpush1.msra.mxu0 0.0
  %2007 = vmatprep.subr.mxu0 0.0
  %2008 = vmatpush1.msra.mxu0 0.0
  %2009 = vmatprep.subr.mxu0 0.0
  %2010 = vmatpush1.msra.mxu0 0.0
  %2011 = vmatprep.subr.mxu0 0.0
  %2012 = vmatpush1.msra.mxu0 0.0
  %2013 = vmatprep.subr.mxu0 0.0
  %2014 = vmatpush1.msra.mxu0 0.0
  %2015 = vmatprep.subr.mxu0 0.0
  %2016 = vmatpush1.msra.mxu0 0.0
  %2017 = vmatprep.subr.mxu0 0.0
  %2018 = vmatpush1.msra.mxu0 0.0
  %2019 = vmatprep.subr.mxu0 0.0
  %2020 = vmatpush1.msra.mxu0 0.0
  %2021 = vmatprep.subr.mxu0 0.0
  %2022 = vmatpush1.msra.mxu0 0.0
  %2023 = vmatprep.subr.mxu0 0.0
  %2024 = vmatpush1.msra.mxu0 0.0
  %2025 = vmatprep.subr.mxu0 %v1627
  %2026 = vmatpush1.msra.mxu0 %v1626
  %2027 = vmatprep.subr.mxu0 0.0
  %2028 = vmatpush2.msra.mxu0 0.0
  %2029 = vmatprep.subr.mxu0 0.0
  %2030 = vmatpush2.msra.mxu0 0.0
  %2031 = vmatprep.subr.mxu0 0.0
  %2032 = vmatpush2.msra.mxu0 0.0
  %2033 = vmatprep.subr.mxu0 0.0
  %2034 = vmatpush2.msra.mxu0 0.0
  %2035 = vmatprep.subr.mxu0 0.0
  %2036 = vmatpush2.msra.mxu0 0.0
  %2037 = vmatprep.subr.mxu0 0.0
  %2038 = vmatpush2.msra.mxu0 0.0
  %2039 = vmatprep.subr.mxu0 0.0
  %2040 = vmatpush2.msra.mxu0 0.0
  %2041 = vmatprep.subr.mxu0 0.0
  %2042 = vmatpush2.msra.mxu0 0.0
  %2043 = vmatprep.subr.mxu0 0.0
  %2044 = vmatpush2.msra.mxu0 0.0
  %2045 = vmatprep.subr.mxu0 0.0
  %2046 = vmatpush2.msra.mxu0 0.0
  %2047 = vmatprep.subr.mxu0 0.0
  %2048 = vmatpush2.msra.mxu0 0.0
  %2049 = vmatprep.subr.mxu0 0.0
  %2050 = vmatpush2.msra.mxu0 0.0
  %2051 = vmatprep.subr.mxu0 0.0
  %2052 = vmatpush2.msra.mxu0 0.0
  %2053 = vmatprep.subr.mxu0 0.0
  %2054 = vmatpush2.msra.mxu0 0.0
  %2055 = vmatprep.subr.mxu0 0.0
  %2056 = vmatpush2.msra.mxu0 0.0
  %2057 = vmatprep.subr.mxu0 0.0
  %2058 = vmatpush2.msra.mxu0 0.0
  %2059 = vmatprep.mubr.f32.mxu0 0.0
  %2060 = vmatmul.mubr.f32.gmra.mxu0 %v1638
  %v2061 = vpop.f32.mrf.mxu0
  %v2062 = vadd.f32 %v1635, %v2061
  %v2063 = vpop.f32.mrf.mxu0
  %v2064 = vadd.f32 %v1635, %v2063
  %2065 = vdwg.mxu0
  %2066 = vmatprep.subr.mxu0 0.0
  %2067 = vmatpush1.msra.mxu0 0.0
  %2068 = vmatprep.subr.mxu0 0.0
  %2069 = vmatpush1.msra.mxu0 0.0
  %2070 = vmatprep.subr.mxu0 0.0
  %2071 = vmatpush1.msra.mxu0 0.0
  %2072 = vmatprep.subr.mxu0 0.0
  %2073 = vmatpush1.msra.mxu0 0.0
  %2074 = vmatprep.subr.mxu0 0.0
  %2075 = vmatpush1.msra.mxu0 0.0
  %2076 = vmatprep.subr.mxu0 0.0
  %2077 = vmatpush1.msra.mxu0 0.0
  %2078 = vmatprep.subr.mxu0 0.0
  %2079 = vmatpush1.msra.mxu0 0.0
  %2080 = vmatprep.subr.mxu0 0.0
  %2081 = vmatpush1.msra.mxu0 0.0
  %2082 = vmatprep.subr.mxu0 0.0
  %2083 = vmatpush1.msra.mxu0 0.0
  %2084 = vmatprep.subr.mxu0 0.0
  %2085 = vmatpush1.msra.mxu0 0.0
  %2086 = vmatprep.subr.mxu0 0.0
  %2087 = vmatpush1.msra.mxu0 0.0
  %2088 = vmatprep.subr.mxu0 0.0
  %2089 = vmatpush1.msra.mxu0 0.0
  %2090 = vmatprep.subr.mxu0 0.0
  %2091 = vmatpush1.msra.mxu0 0.0
  %2092 = vmatprep.subr.mxu0 0.0
  %2093 = vmatpush1.msra.mxu0 0.0
  %2094 = vmatprep.subr.mxu0 0.0
  %2095 = vmatpush1.msra.mxu0 0.0
  %2096 = vmatprep.subr.mxu0 %v1629
  %2097 = vmatpush1.msra.mxu0 %v1628
  %2098 = vmatprep.subr.mxu0 0.0
  %2099 = vmatpush2.msra.mxu0 0.0
  %2100 = vmatprep.subr.mxu0 0.0
  %2101 = vmatpush2.msra.mxu0 0.0
  %2102 = vmatprep.subr.mxu0 0.0
  %2103 = vmatpush2.msra.mxu0 0.0
  %2104 = vmatprep.subr.mxu0 0.0
  %2105 = vmatpush2.msra.mxu0 0.0
  %2106 = vmatprep.subr.mxu0 0.0
  %2107 = vmatpush2.msra.mxu0 0.0
  %2108 = vmatprep.subr.mxu0 0.0
  %2109 = vmatpush2.msra.mxu0 0.0
  %2110 = vmatprep.subr.mxu0 0.0
  %2111 = vmatpush2.msra.mxu0 0.0
  %2112 = vmatprep.subr.mxu0 0.0
  %2113 = vmatpush2.msra.mxu0 0.0
  %2114 = vmatprep.subr.mxu0 0.0
  %2115 = vmatpush2.msra.mxu0 0.0
  %2116 = vmatprep.subr.mxu0 0.0
  %2117 = vmatpush2.msra.mxu0 0.0
  %2118 = vmatprep.subr.mxu0 0.0
  %2119 = vmatpush2.msra.mxu0 0.0
  %2120 = vmatprep.subr.mxu0 0.0
  %2121 = vmatpush2.msra.mxu0 0.0
  %2122 = vmatprep.subr.mxu0 0.0
  %2123 = vmatpush2.msra.mxu0 0.0
  %2124 = vmatprep.subr.mxu0 0.0
  %2125 = vmatpush2.msra.mxu0 0.0
  %2126 = vmatprep.subr.mxu0 0.0
  %2127 = vmatpush2.msra.mxu0 0.0
  %2128 = vmatprep.subr.mxu0 0.0
  %2129 = vmatpush2.msra.mxu0 0.0
  %2130 = vmatprep.mubr.f32.mxu0 0.0
  %2131 = vmatmul.mubr.f32.gmra.mxu0 %v1638
  %v2132 = vpop.f32.mrf.mxu0
  %v2133 = vadd.f32 %v1635, %v2132
  %v2134 = vpop.f32.mrf.mxu0
  %v2135 = vadd.f32 %v1635, %v2134
  %2136 = vdwg.mxu0
  %2137 = vmatprep.subr.mxu0 0.0
  %2138 = vmatpush1.msra.mxu0 0.0
  %2139 = vmatprep.subr.mxu0 0.0
  %2140 = vmatpush1.msra.mxu0 0.0
  %2141 = vmatprep.subr.mxu0 0.0
  %2142 = vmatpush1.msra.mxu0 0.0
  %2143 = vmatprep.subr.mxu0 0.0
  %2144 = vmatpush1.msra.mxu0 0.0
  %2145 = vmatprep.subr.mxu0 0.0
  %2146 = vmatpush1.msra.mxu0 0.0
  %2147 = vmatprep.subr.mxu0 0.0
  %2148 = vmatpush1.msra.mxu0 0.0
  %2149 = vmatprep.subr.mxu0 0.0
  %2150 = vmatpush1.msra.mxu0 0.0
  %2151 = vmatprep.subr.mxu0 0.0
  %2152 = vmatpush1.msra.mxu0 0.0
  %2153 = vmatprep.subr.mxu0 0.0
  %2154 = vmatpush1.msra.mxu0 0.0
  %2155 = vmatprep.subr.mxu0 0.0
  %2156 = vmatpush1.msra.mxu0 0.0
  %2157 = vmatprep.subr.mxu0 0.0
  %2158 = vmatpush1.msra.mxu0 0.0
  %2159 = vmatprep.subr.mxu0 0.0
  %2160 = vmatpush1.msra.mxu0 0.0
  %2161 = vmatprep.subr.mxu0 0.0
  %2162 = vmatpush1.msra.mxu0 0.0
  %2163 = vmatprep.subr.mxu0 0.0
  %2164 = vmatpush1.msra.mxu0 0.0
  %2165 = vmatprep.subr.mxu0 0.0
  %2166 = vmatpush1.msra.mxu0 0.0
  %2167 = vmatprep.subr.mxu0 %v1631
  %2168 = vmatpush1.msra.mxu0 %v1630
  %2169 = vmatprep.subr.mxu0 0.0
  %2170 = vmatpush2.msra.mxu0 0.0
  %2171 = vmatprep.subr.mxu0 0.0
  %2172 = vmatpush2.msra.mxu0 0.0
  %2173 = vmatprep.subr.mxu0 0.0
  %2174 = vmatpush2.msra.mxu0 0.0
  %2175 = vmatprep.subr.mxu0 0.0
  %2176 = vmatpush2.msra.mxu0 0.0
  %2177 = vmatprep.subr.mxu0 0.0
  %2178 = vmatpush2.msra.mxu0 0.0
  %2179 = vmatprep.subr.mxu0 0.0
  %2180 = vmatpush2.msra.mxu0 0.0
  %2181 = vmatprep.subr.mxu0 0.0
  %2182 = vmatpush2.msra.mxu0 0.0
  %2183 = vmatprep.subr.mxu0 0.0
  %2184 = vmatpush2.msra.mxu0 0.0
  %2185 = vmatprep.subr.mxu0 0.0
  %2186 = vmatpush2.msra.mxu0 0.0
  %2187 = vmatprep.subr.mxu0 0.0
  %2188 = vmatpush2.msra.mxu0 0.0
  %2189 = vmatprep.subr.mxu0 0.0
  %2190 = vmatpush2.msra.mxu0 0.0
  %2191 = vmatprep.subr.mxu0 0.0
  %2192 = vmatpush2.msra.mxu0 0.0
  %2193 = vmatprep.subr.mxu0 0.0
  %2194 = vmatpush2.msra.mxu0 0.0
  %2195 = vmatprep.subr.mxu0 0.0
  %2196 = vmatpush2.msra.mxu0 0.0
  %2197 = vmatprep.subr.mxu0 0.0
  %2198 = vmatpush2.msra.mxu0 0.0
  %2199 = vmatprep.subr.mxu0 0.0
  %2200 = vmatpush2.msra.mxu0 0.0
  %2201 = vmatprep.mubr.f32.mxu0 0.0
  %2202 = vmatmul.mubr.f32.gmra.mxu0 %v1638
  %v2203 = vpop.f32.mrf.mxu0
  %v2204 = vadd.f32 %v1635, %v2203
  %v2205 = vpop.f32.mrf.mxu0
  %v2206 = vadd.f32 %v1635, %v2205
  %2207 = vdwg.mxu0
  %v2224 = vcombine.low %v1707, %v1709
  %v2225 = vcombine.low %v1778, %v1780
  %v2227 = vunpack.c.l.s4 1983009808
  %v2228 = vunpack.c.0.s8 %v2227
  %v2229 = vlaneseq
  %v2230 = vshrl.u32 %v2229, 7
  %v2231 = vsub.s32 %v2228, %v2230
  %v2232 = vrot.slane %v2224, %v2231
  %v2234 = vunpack.c.l.s4 1983009808
  %v2235 = vunpack.c.0.s8 %v2234
  %v2236 = vlaneseq
  %v2237 = vshrl.u32 %v2236, 7
  %v2238 = vsub.s32 %v2235, %v2237
  %v2239 = vrot.slane %v2225, %v2238
  %v2240 = vcombine.low %v2232, %v2239
  %v2241 = vcombine.low %v1849, %v1851
  %v2242 = vcombine.low %v1920, %v1922
  %v2244 = vunpack.c.l.s4 1983009808
  %v2245 = vunpack.c.0.s8 %v2244
  %v2246 = vlaneseq
  %v2247 = vshrl.u32 %v2246, 7
  %v2248 = vsub.s32 %v2245, %v2247
  %v2249 = vrot.slane %v2241, %v2248
  %v2251 = vunpack.c.l.s4 1983009808
  %v2252 = vunpack.c.0.s8 %v2251
  %v2253 = vlaneseq
  %v2254 = vshrl.u32 %v2253, 7
  %v2255 = vsub.s32 %v2252, %v2254
  %v2256 = vrot.slane %v2242, %v2255
  %v2257 = vcombine.low %v2249, %v2256
  %v2258 = vcombine.low %v1991, %v1993
  %v2259 = vcombine.low %v2062, %v2064
  %v2261 = vunpack.c.l.s4 1983009808
  %v2262 = vunpack.c.0.s8 %v2261
  %v2263 = vlaneseq
  %v2264 = vshrl.u32 %v2263, 7
  %v2265 = vsub.s32 %v2262, %v2264
  %v2266 = vrot.slane %v2258, %v2265
  %v2268 = vunpack.c.l.s4 1983009808
  %v2269 = vunpack.c.0.s8 %v2268
  %v2270 = vlaneseq
  %v2271 = vshrl.u32 %v2270, 7
  %v2272 = vsub.s32 %v2269, %v2271
  %v2273 = vrot.slane %v2259, %v2272
  %v2274 = vcombine.low %v2266, %v2273
  %v2275 = vcombine.low %v2133, %v2135
  %v2276 = vcombine.low %v2204, %v2206
  %v2278 = vunpack.c.l.s4 1983009808
  %v2279 = vunpack.c.0.s8 %v2278
  %v2280 = vlaneseq
  %v2281 = vshrl.u32 %v2280, 7
  %v2282 = vsub.s32 %v2279, %v2281
  %v2283 = vrot.slane %v2275, %v2282
  %v2285 = vunpack.c.l.s4 1983009808
  %v2286 = vunpack.c.0.s8 %v2285
  %v2287 = vlaneseq
  %v2288 = vshrl.u32 %v2287, 7
  %v2289 = vsub.s32 %v2286, %v2288
  %v2290 = vrot.slane %v2276, %v2289
  %v2291 = vcombine.low %v2283, %v2290
  %2296 = vst [vmem:[%s3] sm:$0xff] %v2240
  %2297 = vst [vmem:[%s3 + $0x8] sm:$0xff] %v2257
  %2298 = vst [vmem:[%s3 + $0x10] sm:$0xff] %v2274
  %2299 = vst [vmem:[%s3 + $0x18] sm:$0xff] %v2291
  // Predicated region
  $region14: #{net_pallas.1} parent=0 // pred_check
    _
  $region15: #{net_pallas.1} parent=0 // pred_check_branch
    %2301 = sbr.rel (0) target = $region17
  $region16: #{net_pallas.1} parent=0 // pred_region
    _
  $region17: #{net_pallas.1} parent=0 // pred_fallthru
    _
  // Predicated region
  $region18: #{net_pallas.1} parent=0 // pred_check
    _
  $region19: #{net_pallas.1} parent=0 // pred_check_branch
    %2303 = sbr.rel (0) target = $region21
  $region20: #{net_pallas.1} parent=0 // pred_region
    _
  $region21: #{net_pallas.1} parent=0 // pred_fallthru
    _

</llo_original>
